<compile_context>
chip_gen: v7x
topology: tpu7x:2x2x1
jax: 0.10.0
libtpu: 0.0.40
codegen_flags: <defaults>
</compile_context>

<pallas_src>
import math
from functools import partial

import jax
import jax.numpy as jnp
from jax import lax
from jax.experimental import pallas as pl
from jax.experimental.pallas import tpu as pltpu


def _attention_head_kernel(x_ref, wqkv_ref, wproj_ref, bproj_ref, o_ref, acc_ref, *,
                           block_batch, n_pad, seq_len, head_dim, approx_recip):
    # x_ref:     (Bb*Np, C)    token slab (block constant across the head axis)
    # wqkv_ref:  (1, C, 3*Dh)  this head's [Q|K|V] projection columns (Q pre-scaled)
    # wproj_ref: (1, Dh, C)    this head's rows of the output projection
    # bproj_ref: (1, C)        output-projection bias
    # o_ref:     (Bb*Np, C)    output slab (written on the last head)
    # acc_ref:   (Bb*Np, C)    f32 accumulator scratch (persists across the head axis)
    h = pl.program_id(1)
    num_heads = pl.num_programs(1)
    dh = head_dim
    rows = block_batch * n_pad
    in_dtype = x_ref.dtype

    @pl.when(h == 0)
    def _init():
        acc_ref[...] = jnp.zeros_like(acc_ref)

    x = x_ref[...]                                                        # (rows, C)

    # Per-head QKV projection (qkv_bias=False) — one MXU matmul, f32 accumulation.
    # Softmax scale already folded into the Q weight columns in the wrapper.
    qkv = jnp.dot(x, wqkv_ref[0], preferred_element_type=jnp.float32)     # (rows, 3*Dh)

    q = qkv[:, 0 * dh:1 * dh].reshape(block_batch, n_pad, dh).astype(in_dtype)
    k = qkv[:, 1 * dh:2 * dh].reshape(block_batch, n_pad, dh).astype(in_dtype)
    v = qkv[:, 2 * dh:3 * dh].reshape(block_batch, n_pad, dh).astype(in_dtype)

    # Scores for this head, batched over the Bb batches in the slab.
    s = jnp.einsum("bqd,bkd->bqk", q, k,
                   preferred_element_type=jnp.float32)                    # (Bb, Np, Np)

    # Mask padded key columns (N was padded to a multiple of 128 in the wrapper).
    if n_pad > seq_len:
        valid = lax.broadcasted_iota(jnp.int32, (1, n_pad, n_pad), 2) < seq_len
        s = jnp.where(valid, s, jnp.float32(-1e30))

    # Numerically-stable softmax with DEFERRED normalization (attn_drop p=0 -> identity).
    s = s - jnp.max(s, axis=-1, keepdims=True)
    p = jnp.exp(s)
    denom = jnp.sum(p, axis=-1, keepdims=True)                            # (Bb, Np, 1)

    pv = jnp.einsum("bqk,bkd->bqd", p.astype(in_dtype), v,
                    preferred_element_type=jnp.float32)                   # (Bb, Np, Dh)
    # Normalize the (Np, Dh) output instead of the (Np, Np) probs; approx reciprocal
    # runs on the EUP slot instead of the contended VALU.
    pv = pv * pl.reciprocal(denom, approx=approx_recip)

    # Head merge folded into the output projection: out += (P@V)_h @ W_proj_rows(h).
    contrib = jnp.dot(pv.reshape(rows, dh).astype(in_dtype), wproj_ref[0],
                      preferred_element_type=jnp.float32)                 # (rows, C)
    acc_ref[...] += contrib

    @pl.when(h == num_heads - 1)
    def _finalize():
        out = acc_ref[...] + bproj_ref[...].astype(jnp.float32)           # proj bias
        o_ref[...] = out.astype(o_ref.dtype)                              # proj_drop p=0 -> id


def _round_up(x, m):
    return ((x + m - 1) // m) * m


def _vmem_footprint_bytes(bb, n_pad, channels, head_dim, itemsize):
    """Rough per-grid-step VMEM footprint (only ONE head's N^2 matrices are live)."""
    rows = bb * n_pad
    io = 2 * (2 * rows * channels * itemsize)                     # x + out, double-buffered
    weights = 2 * (channels * 3 * head_dim + head_dim * channels + channels) * itemsize
    acc = rows * channels * 4                                     # f32 accumulator scratch
    scores = 2 * bb * n_pad * n_pad * 4                           # s + p for one head (f32)
    temps = (rows * 3 * head_dim * 4                              # qkv (f32)
             + 3 * rows * head_dim * itemsize                     # q/k/v head views
             + rows * head_dim * 4                                # pv (f32)
             + rows * channels * 4)                               # per-head contribution
    return io + weights + acc + scores + temps


def _pick_block_batch(batch, n_pad, channels, head_dim, itemsize, budget_bytes):
    # Keep >= 2 steps on the 'parallel' batch axis when B > 1 so v7x's two TensorCores
    # both get work, and pick the largest divisor of B whose footprint fits the budget.
    max_bb = 1 if batch == 1 else max(1, batch // 2)
    best = 1
    for bb in range(1, max_bb + 1):
        if batch % bb:
            continue
        if _vmem_footprint_bytes(bb, n_pad, channels, head_dim, itemsize) <= budget_bytes:
            best = bb
    return best


def standard_attention(x, w_qkv, w_proj, b_proj, *, num_heads, approx_recip=True):
    B, N, C = x.shape
    assert C % num_heads == 0
    head_dim = C // num_heads
    scale = head_dim ** (-0.5)
    itemsize = jnp.dtype(x.dtype).itemsize

    # Pad the sequence to a multiple of 128 (ViT N=197 -> 256); padded keys masked in-kernel.
    n_pad = _round_up(N, 128)

    # Generation-aware VMEM ceiling: ~80% of physical, never above 100 MiB.
    try:
        vmem_cap = int(pltpu.get_tpu_info().vmem_capacity_bytes)
    except Exception:
        vmem_cap = 128 * 1024 * 1024
    vmem_ceiling = min(int(vmem_cap * 0.8), 100 * 1024 * 1024)

    bb = _pick_block_batch(B, n_pad, C, head_dim, itemsize,
                           budget_bytes=int(vmem_ceiling * 0.7))
    rows = bb * n_pad
    grid = (B // bb, num_heads)

    footprint = _vmem_footprint_bytes(bb, n_pad, C, head_dim, itemsize)
    vmem_limit = int(min(vmem_ceiling, max(32 * 1024 * 1024, 2 * footprint)))

    # ---- One-time weight re-layout in the wrapper (O(C^2), outside the kernel). ----
    # nn.Linear qkv output feature order is [3, H, Dh]; scale folded into the Q columns.
    wq = w_qkv[:, 0 * C:1 * C] * jnp.asarray(scale, w_qkv.dtype)
    wk = w_qkv[:, 1 * C:2 * C]
    wv = w_qkv[:, 2 * C:3 * C]

    def head_major(w):                          # (C, H*Dh) -> (H, C, Dh)
        return jnp.transpose(w.reshape(C, num_heads, head_dim), (1, 0, 2))

    wqkv_h = jnp.concatenate(
        [head_major(wq), head_major(wk), head_major(wv)], axis=-1)   # (H, C, 3*Dh)
    wproj_h = w_proj.reshape(num_heads, head_dim, C)                  # (H, Dh, C)
    bproj2 = b_proj.reshape(1, C)

    # ---- Pad + flatten tokens to a lane-dense (B*Np, C) slab. ----
    if n_pad > N:
        x = jnp.pad(x, ((0, 0), (0, n_pad - N), (0, 0)))
    x2 = x.reshape(B * n_pad, C)

    kernel = partial(_attention_head_kernel, block_batch=bb, n_pad=n_pad,
                     seq_len=N, head_dim=head_dim, approx_recip=approx_recip)

    flops = (2 * B * n_pad * C * 3 * C                        # QKV projection
             + 4 * B * num_heads * n_pad * n_pad * head_dim   # QK^T + PV
             + 2 * B * n_pad * C * C)                         # output projection
    cost = pl.CostEstimate(
        flops=flops,
        transcendentals=B * num_heads * n_pad * n_pad,        # softmax exp
        bytes_accessed=itemsize * (2 * B * n_pad * C
                                   + (B // bb) * (3 * C * C + C * C) + C))

    out2 = pl.pallas_call(
        kernel,
        out_shape=jax.ShapeDtypeStruct((B * n_pad, C), x.dtype),
        grid_spec=pltpu.PrefetchScalarGridSpec(
            num_scalar_prefetch=0,
            grid=grid,                                              # (batch blocks, heads)
            in_specs=[
                pl.BlockSpec((rows, C), lambda i, h: (i, 0)),             # token slab
                pl.BlockSpec((1, C, 3 * head_dim), lambda i, h: (h, 0, 0)),  # W_qkv head h
                pl.BlockSpec((1, head_dim, C), lambda i, h: (h, 0, 0)),      # W_proj head h
                pl.BlockSpec((1, C), lambda i, h: (0, 0)),                # proj bias
            ],
            out_specs=pl.BlockSpec((rows, C), lambda i, h: (i, 0)),
            scratch_shapes=[pltpu.VMEM((rows, C), jnp.float32)],          # f32 accumulator
        ),
        compiler_params=pltpu.CompilerParams(
            dimension_semantics=("parallel", "arbitrary"),
            vmem_limit_bytes=vmem_limit,
        ),
        cost_estimate=cost,
    )(x2, wqkv_h, wproj_h, bproj2)

    return out2.reshape(B, n_pad, C)[:, :N, :]


def standard_attention_ref(x, w_qkv, w_proj, b_proj, *, num_heads):
    """Pure-JAX reference mirroring the PyTorch forward."""
    B, N, C = x.shape
    head_dim = C // num_heads
    scale = head_dim ** (-0.5)

    qkv = x @ w_qkv                                            # (B, N, 3C)
    qkv = qkv.reshape(B, N, 3, num_heads, head_dim)
    qkv = jnp.transpose(qkv, (2, 0, 3, 1, 4))                  # (3, B, H, N, Dh)
    q, k, v = qkv[0], qkv[1], qkv[2]
    attn = jnp.einsum("bhnd,bhmd->bhnm", q, k) * scale
    attn = jax.nn.softmax(attn, axis=-1)
    out = jnp.einsum("bhnm,bhmd->bhnd", attn, v)               # (B, H, N, Dh)
    out = jnp.transpose(out, (0, 2, 1, 3)).reshape(B, N, C)
    return out @ w_proj + b_proj[None, None, :]


if __name__ == "__main__":
    # Small shapes consistent with the module: dim=32, num_heads=8 -> head_dim=4
    B, N, C = 2, 8, 32
    num_heads = 8

    key = jax.random.PRNGKey(0)
    kx, kqkv, kproj, kbias = jax.random.split(key, 4)

    # nn.Linear-style deterministic init.
    bound = 1.0 / math.sqrt(C)
    w_qkv = jax.random.uniform(kqkv, (C, 3 * C), jnp.float32, -bound, bound)
    w_proj = jax.random.uniform(kproj, (C, C), jnp.float32, -bound, bound)
    b_proj = jax.random.uniform(kbias, (C,), jnp.float32, -bound, bound)

    x = jax.random.normal(kx, (B, N, C), jnp.float32)

    out = standard_attention(x, w_qkv, w_proj, b_proj, num_heads=num_heads)
    out = jax.block_until_ready(out)

    ref = standard_attention_ref(x, w_qkv, w_proj, b_proj, num_heads=num_heads)

    assert out.shape == (B, N, C)
    # approx reciprocal in the softmax trades ~1e-3 relative error for EUP offload
    # (set approx_recip=False for exact normalization).
    assert jnp.allclose(out, ref, atol=5e-3, rtol=5e-3), "Pallas output mismatch vs reference"

    print("KERNEL_OK")
</pallas_src>

<mosaic_0001>
module attributes {stable_mosaic.version = 11 : i64} {
  func.func @_attention_head_kernel(%arg0: i32, %arg1: i32, %arg2: memref<128x32xf32, #tpu.memory_space<vmem>>, %arg3: memref<1x32x12xf32, #tpu.memory_space<vmem>>, %arg4: memref<1x4x32xf32, #tpu.memory_space<vmem>>, %arg5: memref<1x32xf32, #tpu.memory_space<vmem>>, %arg6: memref<128x32xf32, #tpu.memory_space<vmem>>, %arg7: memref<128x32xf32, #tpu.memory_space<vmem>>) attributes {dimension_semantics = [#tpu.dimension_semantics<parallel>, #tpu.dimension_semantics<arbitrary>], iteration_bounds = array<i64: 2, 8>, scalar_prefetch = 0 : i64, scratch_operands = 1 : i64, tpu.core_type = #tpu.core_type<tc>, window_params = [{transform_indices = @transform_0, window_bounds = array<i64: 128, 32>}, {transform_indices = @transform_1, window_bounds = array<i64: 1, 32, 12>}, {transform_indices = @transform_2, window_bounds = array<i64: 1, 4, 32>}, {pipeline_mode = #tpu.pipeline_mode<synchronous>, transform_indices = @transform_3, window_bounds = array<i64: 1, 32>}, {transform_indices = @transform_4, window_bounds = array<i64: 128, 32>}]} {
    %c0_i32 = arith.constant 0 : i32
    %0 = arith.cmpi eq, %arg1, %c0_i32 : i32
    %1 = arith.extui %0 : i1 to i32
    %c0_i32_0 = arith.constant 0 : i32
    %2 = arith.cmpi ne, %1, %c0_i32_0 : i32
    scf.if %2 {
      %cst_19 = arith.constant 0.000000e+00 : f32
      %40 = vector.broadcast %cst_19 : f32 to vector<128x32xf32>
      %c0_20 = arith.constant 0 : index
      %c0_21 = arith.constant 0 : index
      %41 = vector.load %arg7[%c0_20, %c0_21] : memref<128x32xf32, #tpu.memory_space<vmem>>, vector<128x32xf32>
      tpu.vector_store %arg7[%c0_20, %c0_21], %40 {strides = array<i32>} : memref<128x32xf32, #tpu.memory_space<vmem>>, vector<128x32xf32>,
    } else {
    }
    %c0 = arith.constant 0 : index
    %c0_1 = arith.constant 0 : index
    %3 = vector.load %arg2[%c0, %c0_1] : memref<128x32xf32, #tpu.memory_space<vmem>>, vector<128x32xf32>
    %c0_2 = arith.constant 0 : index
    %c0_3 = arith.constant 0 : index
    %c0_4 = arith.constant 0 : index
    %4 = vector.load %arg3[%c0_2, %c0_3, %c0_4] : memref<1x32x12xf32, #tpu.memory_space<vmem>>, vector<1x32x12xf32>
    %5 = vector.shape_cast %4 : vector<1x32x12xf32> to vector<32x12xf32>
    %cst = arith.constant dense<0.000000e+00> : vector<128x12xf32>
    %6 = tpu.matmul %3, %5, %cst {dimension_numbers = #tpu.dot_dimension_numbers<[1], [0], [0], [1], [0, 0, 1, 1], [], []>} : vector<128x32xf32>, vector<32x12xf32>, vector<128x12xf32> -> vector<128x12xf32>
    %7 = vector.extract_strided_slice %6 {offsets = [0, 0], sizes = [128, 4], strides = [1, 1]} : vector<128x12xf32> to vector<128x4xf32>
    %8 = vector.shape_cast %7 : vector<128x4xf32> to vector<1x128x4xf32>
    %9 = vector.extract_strided_slice %6 {offsets = [0, 4], sizes = [128, 4], strides = [1, 1]} : vector<128x12xf32> to vector<128x4xf32>
    %10 = vector.shape_cast %9 : vector<128x4xf32> to vector<1x128x4xf32>
    %11 = vector.extract_strided_slice %6 {offsets = [0, 8], sizes = [128, 4], strides = [1, 1]} : vector<128x12xf32> to vector<128x4xf32>
    %12 = vector.shape_cast %11 : vector<128x4xf32> to vector<1x128x4xf32>
    "tpu.trace_start"() <{level = 10 : i32, message = "bqd,bkd->bqk"}> : () -> ()
    %cst_5 = arith.constant dense<0.000000e+00> : vector<1x128x128xf32>
    %13 = tpu.matmul %8, %10, %cst_5 {dimension_numbers = #tpu.dot_dimension_numbers<[2], [2], [1], [1], [0, 0, 0, 1, 1, 1], [0], [0]>} : vector<1x128x4xf32>, vector<1x128x4xf32>, vector<1x128x128xf32> -> vector<1x128x128xf32>
    "tpu.trace_stop"() : () -> ()
    %14 = tpu.iota {dimensions = array<i32: 2>} : vector<1x128x128xi32>
    %c8_i32 = arith.constant 8 : i32
    %15 = vector.broadcast %c8_i32 : i32 to vector<1x128x128xi32>
    %16 = arith.cmpi slt, %14, %15 : vector<1x128x128xi32>
    %cst_6 = arith.constant -1.000000e+30 : f32
    %17 = vector.broadcast %cst_6 : f32 to vector<1x128x128xf32>
    %18 = arith.select %16, %13, %17 : vector<1x128x128xi1>, vector<1x128x128xf32>
    %cst_7 = arith.constant dense<0xFF800000> : vector<1x128xf32>
    %19 = vector.multi_reduction <maximumf>, %18, %cst_7 [2] : vector<1x128x128xf32> to vector<1x128xf32>
    %20 = vector.shape_cast %19 : vector<1x128xf32> to vector<1x128x1xf32>
    %21 = vector.broadcast %20 : vector<1x128x1xf32> to vector<1x128x128xf32>
    %22 = arith.subf %18, %21 : vector<1x128x128xf32>
    %23 = math.exp %22 : vector<1x128x128xf32>
    %cst_8 = arith.constant dense<0.000000e+00> : vector<1x128xf32>
    %24 = vector.multi_reduction <add>, %23, %cst_8 [2] : vector<1x128x128xf32> to vector<1x128xf32>
    %25 = vector.shape_cast %24 : vector<1x128xf32> to vector<1x128x1xf32>
    "tpu.trace_start"() <{level = 10 : i32, message = "bqk,bkd->bqd"}> : () -> ()
    %cst_9 = arith.constant dense<0.000000e+00> : vector<1x128x4xf32>
    %26 = tpu.matmul %23, %12, %cst_9 {dimension_numbers = #tpu.dot_dimension_numbers<[2], [1], [1], [2], [0, 0, 0, 1, 1, 2], [0], [0]>} : vector<1x128x128xf32>, vector<1x128x4xf32>, vector<1x128x4xf32> -> vector<1x128x4xf32>
    "tpu.trace_stop"() : () -> ()
    %27 = tpu.reciprocal %25 {approx = true} : vector<1x128x1xf32> -> vector<1x128x1xf32>
    %28 = vector.broadcast %27 : vector<1x128x1xf32> to vector<1x128x4xf32>
    %29 = arith.mulf %26, %28 : vector<1x128x4xf32>
    %30 = vector.shape_cast %29 : vector<1x128x4xf32> to vector<128x4xf32>
    %c0_10 = arith.constant 0 : index
    %c0_11 = arith.constant 0 : index
    %c0_12 = arith.constant 0 : index
    %31 = vector.load %arg4[%c0_10, %c0_11, %c0_12] : memref<1x4x32xf32, #tpu.memory_space<vmem>>, vector<1x4x32xf32>
    %32 = vector.shape_cast %31 : vector<1x4x32xf32> to vector<4x32xf32>
    %cst_13 = arith.constant dense<0.000000e+00> : vector<128x32xf32>
    %33 = tpu.matmul %30, %32, %cst_13 {dimension_numbers = #tpu.dot_dimension_numbers<[1], [0], [0], [1], [0, 0, 1, 1], [], []>} : vector<128x4xf32>, vector<4x32xf32>, vector<128x32xf32> -> vector<128x32xf32>
    %c0_14 = arith.constant 0 : index
    %c0_15 = arith.constant 0 : index
    %34 = vector.load %arg7[%c0_14, %c0_15] : memref<128x32xf32, #tpu.memory_space<vmem>>, vector<128x32xf32>
    %35 = arith.addf %34, %33 : vector<128x32xf32>
    %c0_16 = arith.constant 0 : index
    %c0_17 = arith.constant 0 : index
    %36 = vector.load %arg7[%c0_16, %c0_17] : memref<128x32xf32, #tpu.memory_space<vmem>>, vector<128x32xf32>
    tpu.vector_store %arg7[%c0_16, %c0_17], %35 {strides = array<i32>} : memref<128x32xf32, #tpu.memory_space<vmem>>, vector<128x32xf32>,
    %c7_i32 = arith.constant 7 : i32
    %37 = arith.cmpi eq, %arg1, %c7_i32 : i32
    %38 = arith.extui %37 : i1 to i32
    %c0_i32_18 = arith.constant 0 : i32
    %39 = arith.cmpi ne, %38, %c0_i32_18 : i32
    scf.if %39 {
      %c0_19 = arith.constant 0 : index
      %c0_20 = arith.constant 0 : index
      %40 = vector.load %arg7[%c0_19, %c0_20] : memref<128x32xf32, #tpu.memory_space<vmem>>, vector<128x32xf32>
      %c0_21 = arith.constant 0 : index
      %c0_22 = arith.constant 0 : index
      %41 = vector.load %arg5[%c0_21, %c0_22] : memref<1x32xf32, #tpu.memory_space<vmem>>, vector<1x32xf32>
      %42 = vector.broadcast %41 : vector<1x32xf32> to vector<128x32xf32>
      %43 = arith.addf %40, %42 : vector<128x32xf32>
      %c0_23 = arith.constant 0 : index
      %c0_24 = arith.constant 0 : index
      %44 = vector.load %arg6[%c0_23, %c0_24] : memref<128x32xf32, #tpu.memory_space<vmem>>, vector<128x32xf32>
      tpu.vector_store %arg6[%c0_23, %c0_24], %43 {strides = array<i32>} : memref<128x32xf32, #tpu.memory_space<vmem>>, vector<128x32xf32>,
    } else {
    }
    return
  }
  func.func @transform_0(%arg0: i32, %arg1: i32) -> (i32, i32) {
    %c0_i32 = arith.constant 0 : i32
    %c0_i32_0 = arith.constant 0 : i32
    return %arg0, %c0_i32 : i32, i32
  }
  func.func @transform_1(%arg0: i32, %arg1: i32) -> (i32, i32, i32) {
    %c0_i32 = arith.constant 0 : i32
    %c0_i32_0 = arith.constant 0 : i32
    %c0_i32_1 = arith.constant 0 : i32
    return %arg1, %c0_i32, %c0_i32_0 : i32, i32, i32
  }
  func.func @transform_2(%arg0: i32, %arg1: i32) -> (i32, i32, i32) {
    %c0_i32 = arith.constant 0 : i32
    %c0_i32_0 = arith.constant 0 : i32
    %c0_i32_1 = arith.constant 0 : i32
    return %arg1, %c0_i32, %c0_i32_0 : i32, i32, i32
  }
  func.func @transform_3(%arg0: i32, %arg1: i32) -> (i32, i32) {
    %c0_i32 = arith.constant 0 : i32
    %c0_i32_0 = arith.constant 0 : i32
    %c0_i32_1 = arith.constant 0 : i32
    return %c0_i32, %c0_i32_0 : i32, i32
  }
  func.func @transform_4(%arg0: i32, %arg1: i32) -> (i32, i32) {
    %c0_i32 = arith.constant 0 : i32
    %c0_i32_0 = arith.constant 0 : i32
    return %arg0, %c0_i32 : i32, i32
  }
}

</mosaic_0001>

<llo_original>
// kernel: tpu_custom_call.1
$region0: #{tpu_custom_call.1}
  #allocation0 [shape = 'u32[]', space=smem, size = 0x4, offset = 0x4, fixed_abs, tag = 'smem constant byte address 0x4 - core index']
  #allocation1 [shape = 'u32[144,128]{1,0:T(1,128)}', space=vmem, size = 0x12000, scoped, tag = 'internal scratch']
  #allocation2 [shape = 'f32[128,32]{1,0:T(8,128)}', space=vmem, size = 0x10000, scoped, tag = 'scratch operand']
  %s0 = inlined_call_operand.vmem [shape: f32[256,32], index: 0, kind: input, shape index: {}]
  %s1 = inlined_call_operand.vmem [shape: f32[8,32,12], index: 1, kind: input, shape index: {}]
  %s2 = inlined_call_operand.vmem [shape: f32[8,4,32], index: 2, kind: input, shape index: {}]
  %s3 = inlined_call_operand.vmem [shape: f32[1,32], index: 3, kind: input, shape index: {}]
  %s4 = inlined_call_operand.vmem [shape: f32[256,32], index: 4, kind: output, shape index: {}]
  %s5 = sld [smem:[#allocation0]]
  $region57: #{tpu_custom_call.1} parent=0
    _
  %s7 = ssub.s32 1, %s5
  %s8 = scalar_select 0, %s7, %s5
  loop: start=0, step=1, limit=18
  $region2: #{tpu_custom_call.1} parent=0 // loop_pre_header
    _
  $region3: #{tpu_custom_call.1} parent=0 // loop_header
    %s10 = sphi 0, %s14
    %p11 = scmp.ge.s32.totalorder %s10, 18
    %s17 = sphi 0, %s29
    %s18 = sphi 0, %s25
    %s19 = sphi 0, %s17
    %s20 = sphi 0, %s18
    %s21 = sphi 0, %s19
    %s22 = sphi 0, %s20
    %s32 = sphi 0, %s34
    %s35 = sphi 0, %s32
    %s36 = sphi 0, %s35
    %s52 = sphi 0, %s36
    %s58 = sphi 0, %s60
    %s61 = sphi 0, %s58
    %s62 = sphi 0, %s61
    %s78 = sphi 0, %s62
    %s84 = sphi 0, %s86
    %s87 = sphi 0, %s84
    %s88 = sphi 0, %s87
    %s104 = sphi 0, %s88
    %s108 = sphi 0, %s108
    %s110 = sphi 0, %s108
    %s111 = sphi 0, %s110
    %s125 = sphi 0, %s111
    %s131 = sphi 0, %s133
    %s134 = sphi 0, %s131
    %s135 = sphi 0, %s134
    %s151 = sphi 0, %s135
  $region4: #{tpu_custom_call.1} parent=0 // loop_header_branch
    %13 = sbr.rel (%p11) target = $region8
  $region5: #{tpu_custom_call.1} parent=0 // loop_body
    %s15 = ssub.s32 %s10, 1
    %s16 = ssub.s32 %s10, 2
    %s23 = sadd.s32 1, %s18
    %p24 = scmp.ge.s32.totalorder %s23, 8
    %s25 = scalar_select %p24, 0, %s23
    %s26 = sadd.s32 1, %s17
    %s27 = scalar_select %p24, %s26, %s17
    %p28 = scmp.ge.s32.totalorder %s27, 2
    %s29 = scalar_select %p28, 0, %s27
    %s30 = ssub.s32 %s17, %s29
    %p31 = scmp.eq.s32.totalorder %s30, 0
    %s33 = sadd.s32 %s32, 1
    %s34 = scalar_select %p31, %s32, %s33
    %p37 = pneg %p31
    %p38 = scmp.eq.s32.totalorder %s10, 15
    %p39 = por %p37, %p38
    %p40 = scmp.ne.s32.totalorder %s32, %s35
    %p41 = scmp.eq.s32.totalorder %s10, 0
    %p42 = por %p40, %p41
    %p43 = scmp.ne.s32.totalorder %s32, %s35
    %p44 = scmp.eq.s32.totalorder %s15, 15
    %p45 = por %p43, %p44
    %p46 = scmp.ne.s32.totalorder %s35, %s36
    %p47 = scmp.eq.s32.totalorder %s15, 0
    %p48 = por %p46, %p47
    %p49 = scmp.ne.s32.totalorder %s35, %s36
    %p50 = scmp.eq.s32.totalorder %s16, 15
    %p51 = por %p49, %p50
    %p53 = scmp.ne.s32.totalorder %s36, %s52
    %p54 = scmp.eq.s32.totalorder %s16, 0
    %p55 = por %p53, %p54
    %s56 = ssub.s32 %s18, %s25
    %p57 = scmp.eq.s32.totalorder %s56, 0
    %s59 = sadd.s32 %s58, 1
    %s60 = scalar_select %p57, %s58, %s59
    %p63 = pneg %p57
    %p64 = scmp.eq.s32.totalorder %s10, 15
    %p65 = por %p63, %p64
    %p66 = scmp.ne.s32.totalorder %s58, %s61
    %p67 = scmp.eq.s32.totalorder %s10, 0
    %p68 = por %p66, %p67
    %p69 = scmp.ne.s32.totalorder %s58, %s61
    %p70 = scmp.eq.s32.totalorder %s15, 15
    %p71 = por %p69, %p70
    %p72 = scmp.ne.s32.totalorder %s61, %s62
    %p73 = scmp.eq.s32.totalorder %s15, 0
    %p74 = por %p72, %p73
    %p75 = scmp.ne.s32.totalorder %s61, %s62
    %p76 = scmp.eq.s32.totalorder %s16, 15
    %p77 = por %p75, %p76
    %p79 = scmp.ne.s32.totalorder %s62, %s78
    %p80 = scmp.eq.s32.totalorder %s16, 0
    %p81 = por %p79, %p80
    %s82 = ssub.s32 %s18, %s25
    %p83 = scmp.eq.s32.totalorder %s82, 0
    %s85 = sadd.s32 %s84, 1
    %s86 = scalar_select %p83, %s84, %s85
    %p89 = pneg %p83
    %p90 = scmp.eq.s32.totalorder %s10, 15
    %p91 = por %p89, %p90
    %p92 = scmp.ne.s32.totalorder %s84, %s87
    %p93 = scmp.eq.s32.totalorder %s10, 0
    %p94 = por %p92, %p93
    %p95 = scmp.ne.s32.totalorder %s84, %s87
    %p96 = scmp.eq.s32.totalorder %s15, 15
    %p97 = por %p95, %p96
    %p98 = scmp.ne.s32.totalorder %s87, %s88
    %p99 = scmp.eq.s32.totalorder %s15, 0
    %p100 = por %p98, %p99
    %p101 = scmp.ne.s32.totalorder %s87, %s88
    %p102 = scmp.eq.s32.totalorder %s16, 15
    %p103 = por %p101, %p102
    %p105 = scmp.ne.s32.totalorder %s88, %s104
    %p106 = scmp.eq.s32.totalorder %s16, 0
    %p107 = por %p105, %p106
    %s109 = sadd.s32 %s108, 1
    %p112 = scmp.eq.s32.totalorder %s10, 15
    %p113 = scmp.ne.s32.totalorder %s108, %s110
    %p114 = scmp.eq.s32.totalorder %s10, 0
    %p115 = por %p113, %p114
    %p116 = scmp.ne.s32.totalorder %s108, %s110
    %p117 = scmp.eq.s32.totalorder %s15, 15
    %p118 = por %p116, %p117
    %p119 = scmp.ne.s32.totalorder %s110, %s111
    %p120 = scmp.eq.s32.totalorder %s15, 0
    %p121 = por %p119, %p120
    %p122 = scmp.ne.s32.totalorder %s110, %s111
    %p123 = scmp.eq.s32.totalorder %s16, 15
    %p124 = por %p122, %p123
    %p126 = scmp.ne.s32.totalorder %s111, %s125
    %p127 = scmp.eq.s32.totalorder %s16, 0
    %p128 = por %p126, %p127
    %s129 = ssub.s32 %s17, %s29
    %p130 = scmp.eq.s32.totalorder %s129, 0
    %s132 = sadd.s32 %s131, 1
    %s133 = scalar_select %p130, %s131, %s132
    %p136 = pneg %p130
    %p137 = scmp.eq.s32.totalorder %s10, 15
    %p138 = por %p136, %p137
    %p139 = scmp.ne.s32.totalorder %s131, %s134
    %p140 = scmp.eq.s32.totalorder %s10, 0
    %p141 = por %p139, %p140
    %p142 = scmp.ne.s32.totalorder %s131, %s134
    %p143 = scmp.eq.s32.totalorder %s15, 15
    %p144 = por %p142, %p143
    %p145 = scmp.ne.s32.totalorder %s134, %s135
    %p146 = scmp.eq.s32.totalorder %s15, 0
    %p147 = por %p145, %p146
    %p148 = scmp.ne.s32.totalorder %s134, %s135
    %p149 = scmp.eq.s32.totalorder %s16, 15
    %p150 = por %p148, %p149
    %p152 = scmp.ne.s32.totalorder %s135, %s151
    %p153 = scmp.eq.s32.totalorder %s16, 0
    %p154 = por %p152, %p153
    %p155 = scmp.le.s32.totalorder 1, %s10
    %p156 = scmp.lt.s32.totalorder %s10, 17
    %p157 = pnand %p155, %p156
    %p158 = pneg %p157
    // Predicated region
    $region9: #{tpu_custom_call.1} parent=5 // pred_check
      _
    $region10: #{tpu_custom_call.1} parent=5 // pred_check_branch
      %160 = sbr.rel (%p157) target = $region12
    $region11: #{tpu_custom_call.1} parent=5 // pred_region
      %s161 = ssub.s32 %s10, 1
      // Predicated region
      $region13: #{tpu_custom_call.1} parent=11 // pred_check
        %p162 = pneg %p121
      $region14: #{tpu_custom_call.1} parent=11 // pred_check_branch
        %164 = sbr.rel (%p162) target = $region16
      $region15: #{tpu_custom_call.1} parent=11 // pred_region
        _
      $region16: #{tpu_custom_call.1} parent=11 // pred_fallthru
        _
    $region12: #{tpu_custom_call.1} parent=5 // pred_fallthru
      _
    %p165 = scmp.lt.s32.totalorder %s10, 16
    // Predicated region
    $region17: #{tpu_custom_call.1} parent=5 // pred_check
      %p166 = pneg %p165
    $region18: #{tpu_custom_call.1} parent=5 // pred_check_branch
      %168 = sbr.rel (%p166) target = $region20
    $region19: #{tpu_custom_call.1} parent=5 // pred_region
      // Predicated region
      $region21: #{tpu_custom_call.1} parent=19 // pred_check
        %p169 = pneg %p42
      $region22: #{tpu_custom_call.1} parent=19 // pred_check_branch
        %171 = sbr.rel (%p169) target = $region24
      $region23: #{tpu_custom_call.1} parent=19 // pred_region
        %s172 = smul.u32 16, %s17
        %p173 = scmp.lt.s32.totalorder %s172, 31
        %s174 = scalar_select %p173, %s172, 31
        %s175 = smul.addr %s174, 8
        %s176 = scalar_lea.vmem %s0, %s175
        %s177 = smul.u32 16, %s17
      $region24: #{tpu_custom_call.1} parent=19 // pred_fallthru
        _
      // Predicated region
      $region25: #{tpu_custom_call.1} parent=19 // pred_check
        %p178 = pneg %p68
      $region26: #{tpu_custom_call.1} parent=19 // pred_check_branch
        %180 = sbr.rel (%p178) target = $region28
      $region27: #{tpu_custom_call.1} parent=19 // pred_region
        %p181 = scmp.lt.s32.totalorder %s18, 7
        %s182 = scalar_select %p181, %s18, 7
        %s183 = smul.addr %s182, 4
        %s184 = smul.addr %s183, 8
        %s185 = scalar_lea.vmem %s1, %s184
      $region28: #{tpu_custom_call.1} parent=19 // pred_fallthru
        _
      // Predicated region
      $region29: #{tpu_custom_call.1} parent=19 // pred_check
        %p186 = pneg %p94
      $region30: #{tpu_custom_call.1} parent=19 // pred_check_branch
        %188 = sbr.rel (%p186) target = $region32
      $region31: #{tpu_custom_call.1} parent=19 // pred_region
        %p189 = scmp.lt.s32.totalorder %s18, 7
        %s190 = scalar_select %p189, %s18, 7
        %s191 = smul.addr %s190, 4
        %s192 = scalar_lea.vmem %s2, %s191
      $region32: #{tpu_custom_call.1} parent=19 // pred_fallthru
        _
    $region20: #{tpu_custom_call.1} parent=5 // pred_fallthru
      _
    %p193 = scmp.le.s32.totalorder 1, %s10
    %p194 = scmp.lt.s32.totalorder %s10, 17
    %p195 = pnand %p193, %p194
    %p196 = pneg %p195
    // Predicated region
    $region33: #{tpu_custom_call.1} parent=5 // pred_check
      _
    $region34: #{tpu_custom_call.1} parent=5 // pred_check_branch
      %198 = sbr.rel (%p195) target = $region36
    $region35: #{tpu_custom_call.1} parent=5 // pred_region
      %s199 = ssub.s32 %s10, 1
      %s200 = smul.u32 16, %s19
      %p201 = scmp.lt.s32.totalorder %s200, 31
      %s202 = scalar_select %p201, %s200, 31
      %s203 = smul.addr %s202, 8
      %s204 = scalar_lea.vmem %s0, %s203
      %p205 = pneg %p48
      %p206 = pneg %p45
      %p207 = scmp.lt.s32.totalorder %s20, 7
      %s208 = scalar_select %p207, %s20, 7
      %s209 = smul.addr %s208, 4
      %s210 = smul.addr %s209, 8
      %s211 = scalar_lea.vmem %s1, %s210
      %p212 = pneg %p74
      %p213 = pneg %p71
      %p214 = scmp.lt.s32.totalorder %s20, 7
      %s215 = scalar_select %p214, %s20, 7
      %s216 = smul.addr %s215, 4
      %s217 = scalar_lea.vmem %s2, %s216
      %p218 = pneg %p100
      %p219 = pneg %p97
      %p220 = pneg %p121
      %p221 = pneg %p118
      %p222 = pneg %p147
      %p223 = pneg %p144
      %s224 = smul.u32 16, %s19
      %p225 = scmp.lt.s32.totalorder %s224, 31
      %s226 = scalar_select %p225, %s224, 31
      %s227 = smul.addr %s226, 8
      %s228 = scalar_lea.vmem %s4, %s227
      %s229 = smul.u32 16, %s19
      %p230 = scmp.lt.s32.totalorder %s229, 31
      %s231 = scalar_select %p230, %s229, 31
      %s232 = smul.addr %s231, 8
      %s233 = scalar_lea.vmem %s0, %s232
      %s234 = smul.u32 16, %s19
      %p235 = scmp.lt.s32.totalorder %s20, 7
      %s236 = scalar_select %p235, %s20, 7
      %s237 = smul.addr %s236, 4
      %s238 = smul.addr %s237, 8
      %s239 = scalar_lea.vmem %s1, %s238
      %p240 = scmp.lt.s32.totalorder %s20, 7
      %s241 = scalar_select %p240, %s20, 7
      %s242 = smul.addr %s241, 4
      %s243 = scalar_lea.vmem %s2, %s242
      %s244 = smul.u32 16, %s19
      %p245 = scmp.lt.s32.totalorder %s244, 31
      %s246 = scalar_select %p245, %s244, 31
      %s247 = smul.addr %s246, 8
      %s248 = scalar_lea.vmem %s4, %s247
      %s249 = smul.u32 16, %s19
      %p250 = scmp.eq.s32.totalorder %s20, 0
      // Predicated region
      $region37: #{tpu_custom_call.1} parent=35 // pred_check
        %p251 = pneg %p250
      $region38: #{tpu_custom_call.1} parent=35 // pred_check_branch
        %253 = sbr.rel (%p251) target = $region40
      $region39: #{tpu_custom_call.1} parent=35 // pred_region
        %vm254 = vcmask 261120
        %255 = vst.msk [vmem:[#allocation2] sm:$0xff] %vm254, 0.0
        %256 = vst.msk [vmem:[#allocation2 + $0x8] sm:$0xff] %vm254, 0.0
        %257 = vst.msk [vmem:[#allocation2 + $0x10] sm:$0xff] %vm254, 0.0
        %258 = vst.msk [vmem:[#allocation2 + $0x18] sm:$0xff] %vm254, 0.0
        %259 = vst.msk [vmem:[#allocation2 + $0x20] sm:$0xff] %vm254, 0.0
        %260 = vst.msk [vmem:[#allocation2 + $0x28] sm:$0xff] %vm254, 0.0
        %261 = vst.msk [vmem:[#allocation2 + $0x30] sm:$0xff] %vm254, 0.0
        %262 = vst.msk [vmem:[#allocation2 + $0x38] sm:$0xff] %vm254, 0.0
        %263 = vst.msk [vmem:[#allocation2 + $0x40] sm:$0xff] %vm254, 0.0
        %264 = vst.msk [vmem:[#allocation2 + $0x48] sm:$0xff] %vm254, 0.0
        %265 = vst.msk [vmem:[#allocation2 + $0x50] sm:$0xff] %vm254, 0.0
        %266 = vst.msk [vmem:[#allocation2 + $0x58] sm:$0xff] %vm254, 0.0
        %267 = vst.msk [vmem:[#allocation2 + $0x60] sm:$0xff] %vm254, 0.0
        %268 = vst.msk [vmem:[#allocation2 + $0x68] sm:$0xff] %vm254, 0.0
        %269 = vst.msk [vmem:[#allocation2 + $0x70] sm:$0xff] %vm254, 0.0
        %270 = vst.msk [vmem:[#allocation2 + $0x78] sm:$0xff] %vm254, 0.0
      $region40: #{tpu_custom_call.1} parent=35 // pred_fallthru
        _
      %v271 = vld [vmem:[%s233] sm:$0xff]
      %v272 = vld [vmem:[%s233 + $0x8] sm:$0xff]
      %v273 = vld [vmem:[%s233 + $0x10] sm:$0xff]
      %v274 = vld [vmem:[%s233 + $0x18] sm:$0xff]
      %v275 = vld [vmem:[%s233 + $0x20] sm:$0xff]
      %v276 = vld [vmem:[%s233 + $0x28] sm:$0xff]
      %v277 = vld [vmem:[%s233 + $0x30] sm:$0xff]
      %v278 = vld [vmem:[%s233 + $0x38] sm:$0xff]
      %v279 = vld [vmem:[%s233 + $0x40] sm:$0xff]
      %v280 = vld [vmem:[%s233 + $0x48] sm:$0xff]
      %v281 = vld [vmem:[%s233 + $0x50] sm:$0xff]
      %v282 = vld [vmem:[%s233 + $0x58] sm:$0xff]
      %v283 = vld [vmem:[%s233 + $0x60] sm:$0xff]
      %v284 = vld [vmem:[%s233 + $0x68] sm:$0xff]
      %v285 = vld [vmem:[%s233 + $0x70] sm:$0xff]
      %v286 = vld [vmem:[%s233 + $0x78] sm:$0xff]
      %v287 = vld [vmem:[%s239] sm:$0xff]
      %v288 = vld [vmem:[%s239 + $0x8] sm:$0xff]
      %v289 = vld [vmem:[%s239 + $0x10] sm:$0xff]
      %v290 = vld [vmem:[%s239 + $0x18] sm:$0xff]
      %vm291 = vcmask 261120
      %v293 = vsel %vm291, %v271, 0
      %v296 = vsel %vm291, %v272, 0
      %v299 = vsel %vm291, %v273, 0
      %v302 = vsel %vm291, %v274, 0
      %v305 = vsel %vm291, %v275, 0
      %v308 = vsel %vm291, %v276, 0
      %v311 = vsel %vm291, %v277, 0
      %v314 = vsel %vm291, %v278, 0
      %v317 = vsel %vm291, %v279, 0
      %v320 = vsel %vm291, %v280, 0
      %v323 = vsel %vm291, %v281, 0
      %v326 = vsel %vm291, %v282, 0
      %v329 = vsel %vm291, %v283, 0
      %v332 = vsel %vm291, %v284, 0
      %v335 = vsel %vm291, %v285, 0
      %v338 = vsel %vm291, %v286, 0
      %340 = vmatprep.subr.mxu0 0.0
      %341 = vmatpush1.msra.mxu0 %v287
      %342 = vmatprep.subr.mxu0 0.0
      %343 = vmatpush1.msra.mxu0 %v288
      %344 = vmatprep.subr.mxu0 0.0
      %345 = vmatpush1.msra.mxu0 %v289
      %346 = vmatprep.subr.mxu0 0.0
      %347 = vmatpush1.msra.mxu0 %v290
      %348 = vmatprep.subr.mxu0 0.0
      %349 = vmatpush1.msra.mxu0 0.0
      %350 = vmatprep.subr.mxu0 0.0
      %351 = vmatpush1.msra.mxu0 0.0
      %352 = vmatprep.subr.mxu0 0.0
      %353 = vmatpush1.msra.mxu0 0.0
      %354 = vmatprep.subr.mxu0 0.0
      %355 = vmatpush1.msra.mxu0 0.0
      %356 = vmatprep.subr.mxu0 0.0
      %357 = vmatpush1.msra.mxu0 0.0
      %358 = vmatprep.subr.mxu0 0.0
      %359 = vmatpush1.msra.mxu0 0.0
      %360 = vmatprep.subr.mxu0 0.0
      %361 = vmatpush1.msra.mxu0 0.0
      %362 = vmatprep.subr.mxu0 0.0
      %363 = vmatpush1.msra.mxu0 0.0
      %364 = vmatprep.subr.mxu0 0.0
      %365 = vmatpush1.msra.mxu0 0.0
      %366 = vmatprep.subr.mxu0 0.0
      %367 = vmatpush1.msra.mxu0 0.0
      %368 = vmatprep.subr.mxu0 0.0
      %369 = vmatpush1.msra.mxu0 0.0
      %370 = vmatprep.subr.mxu0 0.0
      %371 = vmatpush1.msra.mxu0 0.0
      %372 = vmatprep.subr.mxu0 0.0
      %373 = vmatpush1.msra.mxu0 0.0
      %374 = vmatprep.subr.mxu0 0.0
      %375 = vmatpush1.msra.mxu0 0.0
      %376 = vmatprep.subr.mxu0 0.0
      %377 = vmatpush1.msra.mxu0 0.0
      %378 = vmatprep.subr.mxu0 0.0
      %379 = vmatpush1.msra.mxu0 0.0
      %380 = vmatprep.subr.mxu0 0.0
      %381 = vmatpush1.msra.mxu0 0.0
      %382 = vmatprep.subr.mxu0 0.0
      %383 = vmatpush1.msra.mxu0 0.0
      %384 = vmatprep.subr.mxu0 0.0
      %385 = vmatpush1.msra.mxu0 0.0
      %386 = vmatprep.subr.mxu0 0.0
      %387 = vmatpush1.msra.mxu0 0.0
      %388 = vmatprep.subr.mxu0 0.0
      %389 = vmatpush1.msra.mxu0 0.0
      %390 = vmatprep.subr.mxu0 0.0
      %391 = vmatpush1.msra.mxu0 0.0
      %392 = vmatprep.subr.mxu0 0.0
      %393 = vmatpush1.msra.mxu0 0.0
      %394 = vmatprep.subr.mxu0 0.0
      %395 = vmatpush1.msra.mxu0 0.0
      %396 = vmatprep.subr.mxu0 0.0
      %397 = vmatpush1.msra.mxu0 0.0
      %398 = vmatprep.subr.mxu0 0.0
      %399 = vmatpush1.msra.mxu0 0.0
      %400 = vmatprep.subr.mxu0 0.0
      %401 = vmatpush1.msra.mxu0 0.0
      %402 = vmatprep.subr.mxu0 0.0
      %403 = vmatpush1.msra.mxu0 0.0
      %404 = vmatprep.mubr.f32.mxu0 0.0
      %405 = vmatmul.mubr.f32.gmra.mrb[0].mxu0 %v293
      %v406 = vpop.f32.mrb[0].mxu0
      %v407 = vadd.f32 0.0, %v406
      %v408 = vpop.f32.mrb[0].mxu0
      %409 = vmatprep.mubr.f32.mxu0 0.0
      %410 = vmatmul.mubr.f32.gmra.mrb[0].mxu0 %v296
      %v411 = vpop.f32.mrb[0].mxu0
      %v412 = vadd.f32 0.0, %v411
      %v413 = vpop.f32.mrb[0].mxu0
      %414 = vmatprep.mubr.f32.mxu0 0.0
      %415 = vmatmul.mubr.f32.gmra.mrb[0].mxu0 %v299
      %v416 = vpop.f32.mrb[0].mxu0
      %v417 = vadd.f32 0.0, %v416
      %v418 = vpop.f32.mrb[0].mxu0
      %419 = vmatprep.mubr.f32.mxu0 0.0
      %420 = vmatmul.mubr.f32.gmra.mrb[0].mxu0 %v302
      %v421 = vpop.f32.mrb[0].mxu0
      %v422 = vadd.f32 0.0, %v421
      %v423 = vpop.f32.mrb[0].mxu0
      %424 = vmatprep.mubr.f32.mxu0 0.0
      %425 = vmatmul.mubr.f32.gmra.mrb[0].mxu0 %v305
      %v426 = vpop.f32.mrb[0].mxu0
      %v427 = vadd.f32 0.0, %v426
      %v428 = vpop.f32.mrb[0].mxu0
      %429 = vmatprep.mubr.f32.mxu0 0.0
      %430 = vmatmul.mubr.f32.gmra.mrb[0].mxu0 %v308
      %v431 = vpop.f32.mrb[0].mxu0
      %v432 = vadd.f32 0.0, %v431
      %v433 = vpop.f32.mrb[0].mxu0
      %434 = vmatprep.mubr.f32.mxu0 0.0
      %435 = vmatmul.mubr.f32.gmra.mrb[0].mxu0 %v311
      %v436 = vpop.f32.mrb[0].mxu0
      %v437 = vadd.f32 0.0, %v436
      %v438 = vpop.f32.mrb[0].mxu0
      %439 = vmatprep.mubr.f32.mxu0 0.0
      %440 = vmatmul.mubr.f32.gmra.mrb[0].mxu0 %v314
      %v441 = vpop.f32.mrb[0].mxu0
      %v442 = vadd.f32 0.0, %v441
      %v443 = vpop.f32.mrb[0].mxu0
      %444 = vmatprep.mubr.f32.mxu0 0.0
      %445 = vmatmul.mubr.f32.gmra.mrb[0].mxu0 %v317
      %v446 = vpop.f32.mrb[0].mxu0
      %v447 = vadd.f32 0.0, %v446
      %v448 = vpop.f32.mrb[0].mxu0
      %449 = vmatprep.mubr.f32.mxu0 0.0
      %450 = vmatmul.mubr.f32.gmra.mrb[0].mxu0 %v320
      %v451 = vpop.f32.mrb[0].mxu0
      %v452 = vadd.f32 0.0, %v451
      %v453 = vpop.f32.mrb[0].mxu0
      %454 = vmatprep.mubr.f32.mxu0 0.0
      %455 = vmatmul.mubr.f32.gmra.mrb[0].mxu0 %v323
      %v456 = vpop.f32.mrb[0].mxu0
      %v457 = vadd.f32 0.0, %v456
      %v458 = vpop.f32.mrb[0].mxu0
      %459 = vmatprep.mubr.f32.mxu0 0.0
      %460 = vmatmul.mubr.f32.gmra.mrb[0].mxu0 %v326
      %v461 = vpop.f32.mrb[0].mxu0
      %v462 = vadd.f32 0.0, %v461
      %v463 = vpop.f32.mrb[0].mxu0
      %464 = vmatprep.mubr.f32.mxu0 0.0
      %465 = vmatmul.mubr.f32.gmra.mrb[0].mxu0 %v329
      %v466 = vpop.f32.mrb[0].mxu0
      %v467 = vadd.f32 0.0, %v466
      %v468 = vpop.f32.mrb[0].mxu0
      %469 = vmatprep.mubr.f32.mxu0 0.0
      %470 = vmatmul.mubr.f32.gmra.mrb[0].mxu0 %v332
      %v471 = vpop.f32.mrb[0].mxu0
      %v472 = vadd.f32 0.0, %v471
      %v473 = vpop.f32.mrb[0].mxu0
      %474 = vmatprep.mubr.f32.mxu0 0.0
      %475 = vmatmul.mubr.f32.gmra.mrb[0].mxu0 %v335
      %v476 = vpop.f32.mrb[0].mxu0
      %v477 = vadd.f32 0.0, %v476
      %v478 = vpop.f32.mrb[0].mxu0
      %479 = vmatprep.mubr.f32.mxu0 0.0
      %480 = vmatmul.mubr.f32.gmra.mrb[0].mxu0 %v338
      %v481 = vpop.f32.mrb[0].mxu0
      %v482 = vadd.f32 0.0, %v481
      %v483 = vpop.f32.mrb[0].mxu0
      %484 = vdwg.mxu0
      %501 = vrot.lane.b32.xlu0 %v407, 124
      %v502 = vpop.permute.xlu0 %501
      %503 = vrot.lane.b32.xlu0 %v412, 124
      %v504 = vpop.permute.xlu0 %503
      %505 = vrot.lane.b32.xlu0 %v417, 124
      %v506 = vpop.permute.xlu0 %505
      %507 = vrot.lane.b32.xlu0 %v422, 124
      %v508 = vpop.permute.xlu0 %507
      %509 = vrot.lane.b32.xlu0 %v427, 124
      %v510 = vpop.permute.xlu0 %509
      %511 = vrot.lane.b32.xlu0 %v432, 124
      %v512 = vpop.permute.xlu0 %511
      %513 = vrot.lane.b32.xlu0 %v437, 124
      %v514 = vpop.permute.xlu0 %513
      %515 = vrot.lane.b32.xlu0 %v442, 124
      %v516 = vpop.permute.xlu0 %515
      %517 = vrot.lane.b32.xlu0 %v447, 124
      %v518 = vpop.permute.xlu0 %517
      %519 = vrot.lane.b32.xlu0 %v452, 124
      %v520 = vpop.permute.xlu0 %519
      %521 = vrot.lane.b32.xlu0 %v457, 124
      %v522 = vpop.permute.xlu0 %521
      %523 = vrot.lane.b32.xlu0 %v462, 124
      %v524 = vpop.permute.xlu0 %523
      %525 = vrot.lane.b32.xlu0 %v467, 124
      %v526 = vpop.permute.xlu0 %525
      %527 = vrot.lane.b32.xlu0 %v472, 124
      %v528 = vpop.permute.xlu0 %527
      %529 = vrot.lane.b32.xlu0 %v477, 124
      %v530 = vpop.permute.xlu0 %529
      %531 = vrot.lane.b32.xlu0 %v482, 124
      %v532 = vpop.permute.xlu0 %531
      %vm533 = vcmask 31744
      %v534 = vsel %vm533, %v407, 0
      %v536 = vsel %vm533, %v412, 0
      %v538 = vsel %vm533, %v417, 0
      %v540 = vsel %vm533, %v422, 0
      %v542 = vsel %vm533, %v427, 0
      %v544 = vsel %vm533, %v432, 0
      %v546 = vsel %vm533, %v437, 0
      %v548 = vsel %vm533, %v442, 0
      %v550 = vsel %vm533, %v447, 0
      %v552 = vsel %vm533, %v452, 0
      %v554 = vsel %vm533, %v457, 0
      %v556 = vsel %vm533, %v462, 0
      %v558 = vsel %vm533, %v467, 0
      %v560 = vsel %vm533, %v472, 0
      %v562 = vsel %vm533, %v477, 0
      %v564 = vsel %vm533, %v482, 0
      %v566 = vsel %vm533, %v502, 0
      %v568 = vsel %vm533, %v504, 0
      %v570 = vsel %vm533, %v506, 0
      %v572 = vsel %vm533, %v508, 0
      %v574 = vsel %vm533, %v510, 0
      %v576 = vsel %vm533, %v512, 0
      %v578 = vsel %vm533, %v514, 0
      %v580 = vsel %vm533, %v516, 0
      %v582 = vsel %vm533, %v518, 0
      %v584 = vsel %vm533, %v520, 0
      %v586 = vsel %vm533, %v522, 0
      %v588 = vsel %vm533, %v524, 0
      %v590 = vsel %vm533, %v526, 0
      %v592 = vsel %vm533, %v528, 0
      %v594 = vsel %vm533, %v530, 0
      %v596 = vsel %vm533, %v532, 0
      %598 = vmatprep.subr.mxu0 0.0
      %599 = vmatpush1.xpose.msra.mxu0 %v566
      %600 = vmatprep.subr.mxu0 0.0
      %601 = vmatpush1.xpose.msra.mxu0 %v568
      %602 = vmatprep.subr.mxu0 0.0
      %603 = vmatpush1.xpose.msra.mxu0 %v570
      %604 = vmatprep.subr.mxu0 0.0
      %605 = vmatpush1.xpose.msra.mxu0 %v572
      %606 = vmatprep.subr.mxu0 0.0
      %607 = vmatpush1.xpose.msra.mxu0 %v574
      %608 = vmatprep.subr.mxu0 0.0
      %609 = vmatpush1.xpose.msra.mxu0 %v576
      %610 = vmatprep.subr.mxu0 0.0
      %611 = vmatpush1.xpose.msra.mxu0 %v578
      %612 = vmatprep.subr.mxu0 0.0
      %613 = vmatpush1.xpose.msra.mxu0 %v580
      %614 = vmatprep.subr.mxu0 0.0
      %615 = vmatpush1.xpose.msra.mxu0 %v582
      %616 = vmatprep.subr.mxu0 0.0
      %617 = vmatpush1.xpose.msra.mxu0 %v584
      %618 = vmatprep.subr.mxu0 0.0
      %619 = vmatpush1.xpose.msra.mxu0 %v586
      %620 = vmatprep.subr.mxu0 0.0
      %621 = vmatpush1.xpose.msra.mxu0 %v588
      %622 = vmatprep.subr.mxu0 0.0
      %623 = vmatpush1.xpose.msra.mxu0 %v590
      %624 = vmatprep.subr.mxu0 0.0
      %625 = vmatpush1.xpose.msra.mxu0 %v592
      %626 = vmatprep.subr.mxu0 0.0
      %627 = vmatpush1.xpose.msra.mxu0 %v594
      %628 = vmatprep.subr.mxu0 0.0
      %629 = vmatpush1.xpose.msra.mxu0 %v596
      %630 = vmatprep.subr.mxu0 0.0
      %631 = vmatpush1.xpose.msra.mxu0 0.0
      %632 = vmatprep.subr.mxu0 0.0
      %633 = vmatpush1.xpose.msra.mxu0 0.0
      %634 = vmatprep.subr.mxu0 0.0
      %635 = vmatpush1.xpose.msra.mxu0 0.0
      %636 = vmatprep.subr.mxu0 0.0
      %637 = vmatpush1.xpose.msra.mxu0 0.0
      %638 = vmatprep.subr.mxu0 0.0
      %639 = vmatpush1.xpose.msra.mxu0 0.0
      %640 = vmatprep.subr.mxu0 0.0
      %641 = vmatpush1.xpose.msra.mxu0 0.0
      %642 = vmatprep.subr.mxu0 0.0
      %643 = vmatpush1.xpose.msra.mxu0 0.0
      %644 = vmatprep.subr.mxu0 0.0
      %645 = vmatpush1.xpose.msra.mxu0 0.0
      %646 = vmatprep.subr.mxu0 0.0
      %647 = vmatpush1.xpose.msra.mxu0 0.0
      %648 = vmatprep.subr.mxu0 0.0
      %649 = vmatpush1.xpose.msra.mxu0 0.0
      %650 = vmatprep.subr.mxu0 0.0
      %651 = vmatpush1.xpose.msra.mxu0 0.0
      %652 = vmatprep.subr.mxu0 0.0
      %653 = vmatpush1.xpose.msra.mxu0 0.0
      %654 = vmatprep.subr.mxu0 0.0
      %655 = vmatpush1.xpose.msra.mxu0 0.0
      %656 = vmatprep.subr.mxu0 0.0
      %657 = vmatpush1.xpose.msra.mxu0 0.0
      %658 = vmatprep.subr.mxu0 0.0
      %659 = vmatpush1.xpose.msra.mxu0 0.0
      %660 = vmatprep.subr.mxu0 0.0
      %661 = vmatpush1.xpose.msra.mxu0 0.0
      %662 = vmatprep.mubr.f32.mxu0 0.0
      %663 = vmatmul.mubr.f32.gmra.mrb[0].mxu0 %v534
      %v664 = vpop.f32.mrb[0].mxu0
      %v665 = vadd.f32 0.0, %v664
      %v666 = vpop.f32.mrb[0].mxu0
      %667 = vmatprep.mubr.f32.mxu0 0.0
      %668 = vmatmul.mubr.f32.gmra.mrb[0].mxu0 %v536
      %v669 = vpop.f32.mrb[0].mxu0
      %v670 = vadd.f32 0.0, %v669
      %v671 = vpop.f32.mrb[0].mxu0
      %672 = vmatprep.mubr.f32.mxu0 0.0
      %673 = vmatmul.mubr.f32.gmra.mrb[0].mxu0 %v538
      %v674 = vpop.f32.mrb[0].mxu0
      %v675 = vadd.f32 0.0, %v674
      %v676 = vpop.f32.mrb[0].mxu0
      %677 = vmatprep.mubr.f32.mxu0 0.0
      %678 = vmatmul.mubr.f32.gmra.mrb[0].mxu0 %v540
      %v679 = vpop.f32.mrb[0].mxu0
      %v680 = vadd.f32 0.0, %v679
      %v681 = vpop.f32.mrb[0].mxu0
      %682 = vmatprep.mubr.f32.mxu0 0.0
      %683 = vmatmul.mubr.f32.gmra.mrb[0].mxu0 %v542
      %v684 = vpop.f32.mrb[0].mxu0
      %v685 = vadd.f32 0.0, %v684
      %v686 = vpop.f32.mrb[0].mxu0
      %687 = vmatprep.mubr.f32.mxu0 0.0
      %688 = vmatmul.mubr.f32.gmra.mrb[0].mxu0 %v544
      %v689 = vpop.f32.mrb[0].mxu0
      %v690 = vadd.f32 0.0, %v689
      %v691 = vpop.f32.mrb[0].mxu0
      %692 = vmatprep.mubr.f32.mxu0 0.0
      %693 = vmatmul.mubr.f32.gmra.mrb[0].mxu0 %v546
      %v694 = vpop.f32.mrb[0].mxu0
      %v695 = vadd.f32 0.0, %v694
      %v696 = vpop.f32.mrb[0].mxu0
      %697 = vmatprep.mubr.f32.mxu0 0.0
      %698 = vmatmul.mubr.f32.gmra.mrb[0].mxu0 %v548
      %v699 = vpop.f32.mrb[0].mxu0
      %v700 = vadd.f32 0.0, %v699
      %v701 = vpop.f32.mrb[0].mxu0
      %702 = vmatprep.mubr.f32.mxu0 0.0
      %703 = vmatmul.mubr.f32.gmra.mrb[0].mxu0 %v550
      %v704 = vpop.f32.mrb[0].mxu0
      %v705 = vadd.f32 0.0, %v704
      %v706 = vpop.f32.mrb[0].mxu0
      %707 = vmatprep.mubr.f32.mxu0 0.0
      %708 = vmatmul.mubr.f32.gmra.mrb[0].mxu0 %v552
      %v709 = vpop.f32.mrb[0].mxu0
      %v710 = vadd.f32 0.0, %v709
      %v711 = vpop.f32.mrb[0].mxu0
      %712 = vmatprep.mubr.f32.mxu0 0.0
      %713 = vmatmul.mubr.f32.gmra.mrb[0].mxu0 %v554
      %v714 = vpop.f32.mrb[0].mxu0
      %v715 = vadd.f32 0.0, %v714
      %v716 = vpop.f32.mrb[0].mxu0
      %717 = vmatprep.mubr.f32.mxu0 0.0
      %718 = vmatmul.mubr.f32.gmra.mrb[0].mxu0 %v556
      %v719 = vpop.f32.mrb[0].mxu0
      %v720 = vadd.f32 0.0, %v719
      %v721 = vpop.f32.mrb[0].mxu0
      %722 = vmatprep.mubr.f32.mxu0 0.0
      %723 = vmatmul.mubr.f32.gmra.mrb[0].mxu0 %v558
      %v724 = vpop.f32.mrb[0].mxu0
      %v725 = vadd.f32 0.0, %v724
      %v726 = vpop.f32.mrb[0].mxu0
      %727 = vmatprep.mubr.f32.mxu0 0.0
      %728 = vmatmul.mubr.f32.gmra.mrb[0].mxu0 %v560
      %v729 = vpop.f32.mrb[0].mxu0
      %v730 = vadd.f32 0.0, %v729
      %v731 = vpop.f32.mrb[0].mxu0
      %732 = vmatprep.mubr.f32.mxu0 0.0
      %733 = vmatmul.mubr.f32.gmra.mrb[0].mxu0 %v562
      %v734 = vpop.f32.mrb[0].mxu0
      %v735 = vadd.f32 0.0, %v734
      %v736 = vpop.f32.mrb[0].mxu0
      %737 = vmatprep.mubr.f32.mxu0 0.0
      %738 = vmatmul.mubr.f32.gmra.mrb[0].mxu0 %v564
      %v739 = vpop.f32.mrb[0].mxu0
      %v740 = vadd.f32 0.0, %v739
      %v741 = vpop.f32.mrb[0].mxu0
      %742 = vdwg.mxu0
      %v743 = vlaneseq
      %v744 = vand.u32 %v743, 127
      %vm745 = vcmp.lt.s32.totalorder %v744, 8
      %v746 = vsel %vm745, %v665, -1e+30
      %v747 = vsel %vm745, %v670, -1e+30
      %v748 = vsel %vm745, %v675, -1e+30
      %v749 = vsel %vm745, %v680, -1e+30
      %v750 = vsel %vm745, %v685, -1e+30
      %v751 = vsel %vm745, %v690, -1e+30
      %v752 = vsel %vm745, %v695, -1e+30
      %v753 = vsel %vm745, %v700, -1e+30
      %v754 = vsel %vm745, %v705, -1e+30
      %v755 = vsel %vm745, %v710, -1e+30
      %v756 = vsel %vm745, %v715, -1e+30
      %v757 = vsel %vm745, %v720, -1e+30
      %v758 = vsel %vm745, %v725, -1e+30
      %v759 = vsel %vm745, %v730, -1e+30
      %v760 = vsel %vm745, %v735, -1e+30
      %v761 = vsel %vm745, %v740, -1e+30
      %762 = vmax.xlane.f32.xlu0 %v746
      %v763 = vpop.xlane.xlu0 %762
      %764 = vmax.xlane.f32.xlu0 %v747
      %v765 = vpop.xlane.xlu0 %764
      %766 = vmax.xlane.f32.xlu0 %v748
      %v767 = vpop.xlane.xlu0 %766
      %768 = vmax.xlane.f32.xlu0 %v749
      %v769 = vpop.xlane.xlu0 %768
      %770 = vmax.xlane.f32.xlu0 %v750
      %v771 = vpop.xlane.xlu0 %770
      %772 = vmax.xlane.f32.xlu0 %v751
      %v773 = vpop.xlane.xlu0 %772
      %774 = vmax.xlane.f32.xlu0 %v752
      %v775 = vpop.xlane.xlu0 %774
      %776 = vmax.xlane.f32.xlu0 %v753
      %v777 = vpop.xlane.xlu0 %776
      %778 = vmax.xlane.f32.xlu0 %v754
      %v779 = vpop.xlane.xlu0 %778
      %780 = vmax.xlane.f32.xlu0 %v755
      %v781 = vpop.xlane.xlu0 %780
      %782 = vmax.xlane.f32.xlu0 %v756
      %v783 = vpop.xlane.xlu0 %782
      %784 = vmax.xlane.f32.xlu0 %v757
      %v785 = vpop.xlane.xlu0 %784
      %786 = vmax.xlane.f32.xlu0 %v758
      %v787 = vpop.xlane.xlu0 %786
      %788 = vmax.xlane.f32.xlu0 %v759
      %v789 = vpop.xlane.xlu0 %788
      %790 = vmax.xlane.f32.xlu0 %v760
      %v791 = vpop.xlane.xlu0 %790
      %792 = vmax.xlane.f32.xlu0 %v761
      %v793 = vpop.xlane.xlu0 %792
      %v794 = vsub.f32 %v746, %v763
      %v795 = vsub.f32 %v747, %v765
      %v796 = vsub.f32 %v748, %v767
      %v797 = vsub.f32 %v749, %v769
      %v798 = vsub.f32 %v750, %v771
      %v799 = vsub.f32 %v751, %v773
      %v800 = vsub.f32 %v752, %v775
      %v801 = vsub.f32 %v753, %v777
      %v802 = vsub.f32 %v754, %v779
      %v803 = vsub.f32 %v755, %v781
      %v804 = vsub.f32 %v756, %v783
      %v805 = vsub.f32 %v757, %v785
      %v806 = vsub.f32 %v758, %v787
      %v807 = vsub.f32 %v759, %v789
      %v808 = vsub.f32 %v760, %v791
      %v809 = vsub.f32 %v761, %v793
      %v810 = vmul.f32 %v794, 1.442695
      %v811 = vpow.pop %v810
      %v812 = vmul.f32 %v795, 1.442695
      %v813 = vpow.pop %v812
      %v814 = vmul.f32 %v796, 1.442695
      %v815 = vpow.pop %v814
      %v816 = vmul.f32 %v797, 1.442695
      %v817 = vpow.pop %v816
      %v818 = vmul.f32 %v798, 1.442695
      %v819 = vpow.pop %v818
      %v820 = vmul.f32 %v799, 1.442695
      %v821 = vpow.pop %v820
      %v822 = vmul.f32 %v800, 1.442695
      %v823 = vpow.pop %v822
      %v824 = vmul.f32 %v801, 1.442695
      %v825 = vpow.pop %v824
      %v826 = vmul.f32 %v802, 1.442695
      %v827 = vpow.pop %v826
      %v828 = vmul.f32 %v803, 1.442695
      %v829 = vpow.pop %v828
      %v830 = vmul.f32 %v804, 1.442695
      %v831 = vpow.pop %v830
      %v832 = vmul.f32 %v805, 1.442695
      %v833 = vpow.pop %v832
      %v834 = vmul.f32 %v806, 1.442695
      %v835 = vpow.pop %v834
      %v836 = vmul.f32 %v807, 1.442695
      %v837 = vpow.pop %v836
      %v838 = vmul.f32 %v808, 1.442695
      %v839 = vpow.pop %v838
      %v840 = vmul.f32 %v809, 1.442695
      %v841 = vpow.pop %v840
      %842 = vadd.xlane.f32.xlu0 %v811
      %v843 = vpop.xlane.xlu0 %842
      %844 = vadd.xlane.f32.xlu0 %v813
      %v845 = vpop.xlane.xlu0 %844
      %846 = vadd.xlane.f32.xlu0 %v815
      %v847 = vpop.xlane.xlu0 %846
      %848 = vadd.xlane.f32.xlu0 %v817
      %v849 = vpop.xlane.xlu0 %848
      %850 = vadd.xlane.f32.xlu0 %v819
      %v851 = vpop.xlane.xlu0 %850
      %852 = vadd.xlane.f32.xlu0 %v821
      %v853 = vpop.xlane.xlu0 %852
      %854 = vadd.xlane.f32.xlu0 %v823
      %v855 = vpop.xlane.xlu0 %854
      %856 = vadd.xlane.f32.xlu0 %v825
      %v857 = vpop.xlane.xlu0 %856
      %858 = vadd.xlane.f32.xlu0 %v827
      %v859 = vpop.xlane.xlu0 %858
      %860 = vadd.xlane.f32.xlu0 %v829
      %v861 = vpop.xlane.xlu0 %860
      %862 = vadd.xlane.f32.xlu0 %v831
      %v863 = vpop.xlane.xlu0 %862
      %864 = vadd.xlane.f32.xlu0 %v833
      %v865 = vpop.xlane.xlu0 %864
      %866 = vadd.xlane.f32.xlu0 %v835
      %v867 = vpop.xlane.xlu0 %866
      %868 = vadd.xlane.f32.xlu0 %v837
      %v869 = vpop.xlane.xlu0 %868
      %870 = vadd.xlane.f32.xlu0 %v839
      %v871 = vpop.xlane.xlu0 %870
      %872 = vadd.xlane.f32.xlu0 %v841
      %v873 = vpop.xlane.xlu0 %872
      %874 = vrot.lane.b32.xlu0 %v407, 120
      %v875 = vpop.permute.xlu0 %874
      %876 = vrot.lane.b32.xlu0 %v412, 120
      %v877 = vpop.permute.xlu0 %876
      %878 = vrot.lane.b32.xlu0 %v417, 120
      %v879 = vpop.permute.xlu0 %878
      %880 = vrot.lane.b32.xlu0 %v422, 120
      %v881 = vpop.permute.xlu0 %880
      %882 = vrot.lane.b32.xlu0 %v427, 120
      %v883 = vpop.permute.xlu0 %882
      %884 = vrot.lane.b32.xlu0 %v432, 120
      %v885 = vpop.permute.xlu0 %884
      %886 = vrot.lane.b32.xlu0 %v437, 120
      %v887 = vpop.permute.xlu0 %886
      %888 = vrot.lane.b32.xlu0 %v442, 120
      %v889 = vpop.permute.xlu0 %888
      %890 = vrot.lane.b32.xlu0 %v447, 120
      %v891 = vpop.permute.xlu0 %890
      %892 = vrot.lane.b32.xlu0 %v452, 120
      %v893 = vpop.permute.xlu0 %892
      %894 = vrot.lane.b32.xlu0 %v457, 120
      %v895 = vpop.permute.xlu0 %894
      %896 = vrot.lane.b32.xlu0 %v462, 120
      %v897 = vpop.permute.xlu0 %896
      %898 = vrot.lane.b32.xlu0 %v467, 120
      %v899 = vpop.permute.xlu0 %898
      %900 = vrot.lane.b32.xlu0 %v472, 120
      %v901 = vpop.permute.xlu0 %900
      %902 = vrot.lane.b32.xlu0 %v477, 120
      %v903 = vpop.permute.xlu0 %902
      %904 = vrot.lane.b32.xlu0 %v482, 120
      %v905 = vpop.permute.xlu0 %904
      %922 = vmatprep.subr.mxu0 0.0
      %923 = vmatpush1.msra.mxu0 %v875
      %924 = vmatprep.subr.mxu0 0.0
      %925 = vmatpush1.msra.mxu0 %v877
      %926 = vmatprep.subr.mxu0 0.0
      %927 = vmatpush1.msra.mxu0 %v879
      %928 = vmatprep.subr.mxu0 0.0
      %929 = vmatpush1.msra.mxu0 %v881
      %930 = vmatprep.subr.mxu0 0.0
      %931 = vmatpush1.msra.mxu0 %v883
      %932 = vmatprep.subr.mxu0 0.0
      %933 = vmatpush1.msra.mxu0 %v885
      %934 = vmatprep.subr.mxu0 0.0
      %935 = vmatpush1.msra.mxu0 %v887
      %936 = vmatprep.subr.mxu0 0.0
      %937 = vmatpush1.msra.mxu0 %v889
      %938 = vmatprep.subr.mxu0 0.0
      %939 = vmatpush1.msra.mxu0 %v891
      %940 = vmatprep.subr.mxu0 0.0
      %941 = vmatpush1.msra.mxu0 %v893
      %942 = vmatprep.subr.mxu0 0.0
      %943 = vmatpush1.msra.mxu0 %v895
      %944 = vmatprep.subr.mxu0 0.0
      %945 = vmatpush1.msra.mxu0 %v897
      %946 = vmatprep.subr.mxu0 0.0
      %947 = vmatpush1.msra.mxu0 %v899
      %948 = vmatprep.subr.mxu0 0.0
      %949 = vmatpush1.msra.mxu0 %v901
      %950 = vmatprep.subr.mxu0 0.0
      %951 = vmatpush1.msra.mxu0 %v903
      %952 = vmatprep.subr.mxu0 0.0
      %953 = vmatpush1.msra.mxu0 %v905
      %954 = vmatprep.subr.mxu0 0.0
      %955 = vmatpush1.msra.mxu0 0.0
      %956 = vmatprep.subr.mxu0 0.0
      %957 = vmatpush1.msra.mxu0 0.0
      %958 = vmatprep.subr.mxu0 0.0
      %959 = vmatpush1.msra.mxu0 0.0
      %960 = vmatprep.subr.mxu0 0.0
      %961 = vmatpush1.msra.mxu0 0.0
      %962 = vmatprep.subr.mxu0 0.0
      %963 = vmatpush1.msra.mxu0 0.0
      %964 = vmatprep.subr.mxu0 0.0
      %965 = vmatpush1.msra.mxu0 0.0
      %966 = vmatprep.subr.mxu0 0.0
      %967 = vmatpush1.msra.mxu0 0.0
      %968 = vmatprep.subr.mxu0 0.0
      %969 = vmatpush1.msra.mxu0 0.0
      %970 = vmatprep.subr.mxu0 0.0
      %971 = vmatpush1.msra.mxu0 0.0
      %972 = vmatprep.subr.mxu0 0.0
      %973 = vmatpush1.msra.mxu0 0.0
      %974 = vmatprep.subr.mxu0 0.0
      %975 = vmatpush1.msra.mxu0 0.0
      %976 = vmatprep.subr.mxu0 0.0
      %977 = vmatpush1.msra.mxu0 0.0
      %978 = vmatprep.subr.mxu0 0.0
      %979 = vmatpush1.msra.mxu0 0.0
      %980 = vmatprep.subr.mxu0 0.0
      %981 = vmatpush1.msra.mxu0 0.0
      %982 = vmatprep.subr.mxu0 0.0
      %983 = vmatpush1.msra.mxu0 0.0
      %984 = vmatprep.subr.mxu0 0.0
      %985 = vmatpush1.msra.mxu0 0.0
      %986 = vmatprep.mubr.f32.mxu0 0.0
      %987 = vmatmul.mubr.f32.gmra.mrb[0].mxu0 %v811
      %v988 = vpop.f32.mrb[0].mxu0
      %v989 = vadd.f32 0.0, %v988
      %v990 = vpop.f32.mrb[0].mxu0
      %991 = vmatprep.mubr.f32.mxu0 0.0
      %992 = vmatmul.mubr.f32.gmra.mrb[0].mxu0 %v813
      %v993 = vpop.f32.mrb[0].mxu0
      %v994 = vadd.f32 0.0, %v993
      %v995 = vpop.f32.mrb[0].mxu0
      %996 = vmatprep.mubr.f32.mxu0 0.0
      %997 = vmatmul.mubr.f32.gmra.mrb[0].mxu0 %v815
      %v998 = vpop.f32.mrb[0].mxu0
      %v999 = vadd.f32 0.0, %v998
      %v1000 = vpop.f32.mrb[0].mxu0
      %1001 = vmatprep.mubr.f32.mxu0 0.0
      %1002 = vmatmul.mubr.f32.gmra.mrb[0].mxu0 %v817
      %v1003 = vpop.f32.mrb[0].mxu0
      %v1004 = vadd.f32 0.0, %v1003
      %v1005 = vpop.f32.mrb[0].mxu0
      %1006 = vmatprep.mubr.f32.mxu0 0.0
      %1007 = vmatmul.mubr.f32.gmra.mrb[0].mxu0 %v819
      %v1008 = vpop.f32.mrb[0].mxu0
      %v1009 = vadd.f32 0.0, %v1008
      %v1010 = vpop.f32.mrb[0].mxu0
      %1011 = vmatprep.mubr.f32.mxu0 0.0
      %1012 = vmatmul.mubr.f32.gmra.mrb[0].mxu0 %v821
      %v1013 = vpop.f32.mrb[0].mxu0
      %v1014 = vadd.f32 0.0, %v1013
      %v1015 = vpop.f32.mrb[0].mxu0
      %1016 = vmatprep.mubr.f32.mxu0 0.0
      %1017 = vmatmul.mubr.f32.gmra.mrb[0].mxu0 %v823
      %v1018 = vpop.f32.mrb[0].mxu0
      %v1019 = vadd.f32 0.0, %v1018
      %v1020 = vpop.f32.mrb[0].mxu0
      %1021 = vmatprep.mubr.f32.mxu0 0.0
      %1022 = vmatmul.mubr.f32.gmra.mrb[0].mxu0 %v825
      %v1023 = vpop.f32.mrb[0].mxu0
      %v1024 = vadd.f32 0.0, %v1023
      %v1025 = vpop.f32.mrb[0].mxu0
      %1026 = vmatprep.mubr.f32.mxu0 0.0
      %1027 = vmatmul.mubr.f32.gmra.mrb[0].mxu0 %v827
      %v1028 = vpop.f32.mrb[0].mxu0
      %v1029 = vadd.f32 0.0, %v1028
      %v1030 = vpop.f32.mrb[0].mxu0
      %1031 = vmatprep.mubr.f32.mxu0 0.0
      %1032 = vmatmul.mubr.f32.gmra.mrb[0].mxu0 %v829
      %v1033 = vpop.f32.mrb[0].mxu0
      %v1034 = vadd.f32 0.0, %v1033
      %v1035 = vpop.f32.mrb[0].mxu0
      %1036 = vmatprep.mubr.f32.mxu0 0.0
      %1037 = vmatmul.mubr.f32.gmra.mrb[0].mxu0 %v831
      %v1038 = vpop.f32.mrb[0].mxu0
      %v1039 = vadd.f32 0.0, %v1038
      %v1040 = vpop.f32.mrb[0].mxu0
      %1041 = vmatprep.mubr.f32.mxu0 0.0
      %1042 = vmatmul.mubr.f32.gmra.mrb[0].mxu0 %v833
      %v1043 = vpop.f32.mrb[0].mxu0
      %v1044 = vadd.f32 0.0, %v1043
      %v1045 = vpop.f32.mrb[0].mxu0
      %1046 = vmatprep.mubr.f32.mxu0 0.0
      %1047 = vmatmul.mubr.f32.gmra.mrb[0].mxu0 %v835
      %v1048 = vpop.f32.mrb[0].mxu0
      %v1049 = vadd.f32 0.0, %v1048
      %v1050 = vpop.f32.mrb[0].mxu0
      %1051 = vmatprep.mubr.f32.mxu0 0.0
      %1052 = vmatmul.mubr.f32.gmra.mrb[0].mxu0 %v837
      %v1053 = vpop.f32.mrb[0].mxu0
      %v1054 = vadd.f32 0.0, %v1053
      %v1055 = vpop.f32.mrb[0].mxu0
      %1056 = vmatprep.mubr.f32.mxu0 0.0
      %1057 = vmatmul.mubr.f32.gmra.mrb[0].mxu0 %v839
      %v1058 = vpop.f32.mrb[0].mxu0
      %v1059 = vadd.f32 0.0, %v1058
      %v1060 = vpop.f32.mrb[0].mxu0
      %1061 = vmatprep.mubr.f32.mxu0 0.0
      %1062 = vmatmul.mubr.f32.gmra.mrb[0].mxu0 %v841
      %v1063 = vpop.f32.mrb[0].mxu0
      %v1064 = vadd.f32 0.0, %v1063
      %v1065 = vpop.f32.mrb[0].mxu0
      %1066 = vdwg.mxu0
      %v1067 = vrcp.pop %v843
      %v1068 = vrcp.pop %v845
      %v1069 = vrcp.pop %v847
      %v1070 = vrcp.pop %v849
      %v1071 = vrcp.pop %v851
      %v1072 = vrcp.pop %v853
      %v1073 = vrcp.pop %v855
      %v1074 = vrcp.pop %v857
      %v1075 = vrcp.pop %v859
      %v1076 = vrcp.pop %v861
      %v1077 = vrcp.pop %v863
      %v1078 = vrcp.pop %v865
      %v1079 = vrcp.pop %v867
      %v1080 = vrcp.pop %v869
      %v1081 = vrcp.pop %v871
      %v1082 = vrcp.pop %v873
      %v1083 = vmul.f32 %v989, %v1067
      %v1084 = vmul.f32 %v994, %v1068
      %v1085 = vmul.f32 %v999, %v1069
      %v1086 = vmul.f32 %v1004, %v1070
      %v1087 = vmul.f32 %v1009, %v1071
      %v1088 = vmul.f32 %v1014, %v1072
      %v1089 = vmul.f32 %v1019, %v1073
      %v1090 = vmul.f32 %v1024, %v1074
      %v1091 = vmul.f32 %v1029, %v1075
      %v1092 = vmul.f32 %v1034, %v1076
      %v1093 = vmul.f32 %v1039, %v1077
      %v1094 = vmul.f32 %v1044, %v1078
      %v1095 = vmul.f32 %v1049, %v1079
      %v1096 = vmul.f32 %v1054, %v1080
      %v1097 = vmul.f32 %v1059, %v1081
      %v1098 = vmul.f32 %v1064, %v1082
      %v1099 = vld [vmem:[%s243] sm:$0xf]
      %v1101 = vsel %vm533, %v1083, 0
      %v1104 = vsel %vm533, %v1084, 0
      %v1107 = vsel %vm533, %v1085, 0
      %v1110 = vsel %vm533, %v1086, 0
      %v1113 = vsel %vm533, %v1087, 0
      %v1116 = vsel %vm533, %v1088, 0
      %v1119 = vsel %vm533, %v1089, 0
      %v1122 = vsel %vm533, %v1090, 0
      %v1125 = vsel %vm533, %v1091, 0
      %v1128 = vsel %vm533, %v1092, 0
      %v1131 = vsel %vm533, %v1093, 0
      %v1134 = vsel %vm533, %v1094, 0
      %v1137 = vsel %vm533, %v1095, 0
      %v1140 = vsel %vm533, %v1096, 0
      %v1143 = vsel %vm533, %v1097, 0
      %v1146 = vsel %vm533, %v1098, 0
      %vm1148 = vcmask 1043456
      %v1150 = vsel %vm1148, %v1099, 0
      %1152 = vmatprep.subr.mxu0 0.0
      %1153 = vmatpush1.msra.mxu0 %v1150
      %1154 = vmatprep.subr.mxu0 0.0
      %1155 = vmatpush1.msra.mxu0 0.0
      %1156 = vmatprep.subr.mxu0 0.0
      %1157 = vmatpush1.msra.mxu0 0.0
      %1158 = vmatprep.subr.mxu0 0.0
      %1159 = vmatpush1.msra.mxu0 0.0
      %1160 = vmatprep.subr.mxu0 0.0
      %1161 = vmatpush1.msra.mxu0 0.0
      %1162 = vmatprep.subr.mxu0 0.0
      %1163 = vmatpush1.msra.mxu0 0.0
      %1164 = vmatprep.subr.mxu0 0.0
      %1165 = vmatpush1.msra.mxu0 0.0
      %1166 = vmatprep.subr.mxu0 0.0
      %1167 = vmatpush1.msra.mxu0 0.0
      %1168 = vmatprep.subr.mxu0 0.0
      %1169 = vmatpush1.msra.mxu0 0.0
      %1170 = vmatprep.subr.mxu0 0.0
      %1171 = vmatpush1.msra.mxu0 0.0
      %1172 = vmatprep.subr.mxu0 0.0
      %1173 = vmatpush1.msra.mxu0 0.0
      %1174 = vmatprep.subr.mxu0 0.0
      %1175 = vmatpush1.msra.mxu0 0.0
      %1176 = vmatprep.subr.mxu0 0.0
      %1177 = vmatpush1.msra.mxu0 0.0
      %1178 = vmatprep.subr.mxu0 0.0
      %1179 = vmatpush1.msra.mxu0 0.0
      %1180 = vmatprep.subr.mxu0 0.0
      %1181 = vmatpush1.msra.mxu0 0.0
      %1182 = vmatprep.subr.mxu0 0.0
      %1183 = vmatpush1.msra.mxu0 0.0
      %1184 = vmatprep.subr.mxu0 0.0
      %1185 = vmatpush1.msra.mxu0 0.0
      %1186 = vmatprep.subr.mxu0 0.0
      %1187 = vmatpush1.msra.mxu0 0.0
      %1188 = vmatprep.subr.mxu0 0.0
      %1189 = vmatpush1.msra.mxu0 0.0
      %1190 = vmatprep.subr.mxu0 0.0
      %1191 = vmatpush1.msra.mxu0 0.0
      %1192 = vmatprep.subr.mxu0 0.0
      %1193 = vmatpush1.msra.mxu0 0.0
      %1194 = vmatprep.subr.mxu0 0.0
      %1195 = vmatpush1.msra.mxu0 0.0
      %1196 = vmatprep.subr.mxu0 0.0
      %1197 = vmatpush1.msra.mxu0 0.0
      %1198 = vmatprep.subr.mxu0 0.0
      %1199 = vmatpush1.msra.mxu0 0.0
      %1200 = vmatprep.subr.mxu0 0.0
      %1201 = vmatpush1.msra.mxu0 0.0
      %1202 = vmatprep.subr.mxu0 0.0
      %1203 = vmatpush1.msra.mxu0 0.0
      %1204 = vmatprep.subr.mxu0 0.0
      %1205 = vmatpush1.msra.mxu0 0.0
      %1206 = vmatprep.subr.mxu0 0.0
      %1207 = vmatpush1.msra.mxu0 0.0
      %1208 = vmatprep.subr.mxu0 0.0
      %1209 = vmatpush1.msra.mxu0 0.0
      %1210 = vmatprep.subr.mxu0 0.0
      %1211 = vmatpush1.msra.mxu0 0.0
      %1212 = vmatprep.subr.mxu0 0.0
      %1213 = vmatpush1.msra.mxu0 0.0
      %1214 = vmatprep.subr.mxu0 0.0
      %1215 = vmatpush1.msra.mxu0 0.0
      %1216 = vmatprep.mubr.f32.mxu0 0.0
      %1217 = vmatmul.mubr.f32.gmra.mrb[0].mxu0 %v1101
      %v1218 = vpop.f32.mrb[0].mxu0
      %v1219 = vadd.f32 0.0, %v1218
      %v1220 = vpop.f32.mrb[0].mxu0
      %1221 = vmatprep.mubr.f32.mxu0 0.0
      %1222 = vmatmul.mubr.f32.gmra.mrb[0].mxu0 %v1104
      %v1223 = vpop.f32.mrb[0].mxu0
      %v1224 = vadd.f32 0.0, %v1223
      %v1225 = vpop.f32.mrb[0].mxu0
      %1226 = vmatprep.mubr.f32.mxu0 0.0
      %1227 = vmatmul.mubr.f32.gmra.mrb[0].mxu0 %v1107
      %v1228 = vpop.f32.mrb[0].mxu0
      %v1229 = vadd.f32 0.0, %v1228
      %v1230 = vpop.f32.mrb[0].mxu0
      %1231 = vmatprep.mubr.f32.mxu0 0.0
      %1232 = vmatmul.mubr.f32.gmra.mrb[0].mxu0 %v1110
      %v1233 = vpop.f32.mrb[0].mxu0
      %v1234 = vadd.f32 0.0, %v1233
      %v1235 = vpop.f32.mrb[0].mxu0
      %1236 = vmatprep.mubr.f32.mxu0 0.0
      %1237 = vmatmul.mubr.f32.gmra.mrb[0].mxu0 %v1113
      %v1238 = vpop.f32.mrb[0].mxu0
      %v1239 = vadd.f32 0.0, %v1238
      %v1240 = vpop.f32.mrb[0].mxu0
      %1241 = vmatprep.mubr.f32.mxu0 0.0
      %1242 = vmatmul.mubr.f32.gmra.mrb[0].mxu0 %v1116
      %v1243 = vpop.f32.mrb[0].mxu0
      %v1244 = vadd.f32 0.0, %v1243
      %v1245 = vpop.f32.mrb[0].mxu0
      %1246 = vmatprep.mubr.f32.mxu0 0.0
      %1247 = vmatmul.mubr.f32.gmra.mrb[0].mxu0 %v1119
      %v1248 = vpop.f32.mrb[0].mxu0
      %v1249 = vadd.f32 0.0, %v1248
      %v1250 = vpop.f32.mrb[0].mxu0
      %1251 = vmatprep.mubr.f32.mxu0 0.0
      %1252 = vmatmul.mubr.f32.gmra.mrb[0].mxu0 %v1122
      %v1253 = vpop.f32.mrb[0].mxu0
      %v1254 = vadd.f32 0.0, %v1253
      %v1255 = vpop.f32.mrb[0].mxu0
      %1256 = vmatprep.mubr.f32.mxu0 0.0
      %1257 = vmatmul.mubr.f32.gmra.mrb[0].mxu0 %v1125
      %v1258 = vpop.f32.mrb[0].mxu0
      %v1259 = vadd.f32 0.0, %v1258
      %v1260 = vpop.f32.mrb[0].mxu0
      %1261 = vmatprep.mubr.f32.mxu0 0.0
      %1262 = vmatmul.mubr.f32.gmra.mrb[0].mxu0 %v1128
      %v1263 = vpop.f32.mrb[0].mxu0
      %v1264 = vadd.f32 0.0, %v1263
      %v1265 = vpop.f32.mrb[0].mxu0
      %1266 = vmatprep.mubr.f32.mxu0 0.0
      %1267 = vmatmul.mubr.f32.gmra.mrb[0].mxu0 %v1131
      %v1268 = vpop.f32.mrb[0].mxu0
      %v1269 = vadd.f32 0.0, %v1268
      %v1270 = vpop.f32.mrb[0].mxu0
      %1271 = vmatprep.mubr.f32.mxu0 0.0
      %1272 = vmatmul.mubr.f32.gmra.mrb[0].mxu0 %v1134
      %v1273 = vpop.f32.mrb[0].mxu0
      %v1274 = vadd.f32 0.0, %v1273
      %v1275 = vpop.f32.mrb[0].mxu0
      %1276 = vmatprep.mubr.f32.mxu0 0.0
      %1277 = vmatmul.mubr.f32.gmra.mrb[0].mxu0 %v1137
      %v1278 = vpop.f32.mrb[0].mxu0
      %v1279 = vadd.f32 0.0, %v1278
      %v1280 = vpop.f32.mrb[0].mxu0
      %1281 = vmatprep.mubr.f32.mxu0 0.0
      %1282 = vmatmul.mubr.f32.gmra.mrb[0].mxu0 %v1140
      %v1283 = vpop.f32.mrb[0].mxu0
      %v1284 = vadd.f32 0.0, %v1283
      %v1285 = vpop.f32.mrb[0].mxu0
      %1286 = vmatprep.mubr.f32.mxu0 0.0
      %1287 = vmatmul.mubr.f32.gmra.mrb[0].mxu0 %v1143
      %v1288 = vpop.f32.mrb[0].mxu0
      %v1289 = vadd.f32 0.0, %v1288
      %v1290 = vpop.f32.mrb[0].mxu0
      %1291 = vmatprep.mubr.f32.mxu0 0.0
      %1292 = vmatmul.mubr.f32.gmra.mrb[0].mxu0 %v1146
      %v1293 = vpop.f32.mrb[0].mxu0
      %v1294 = vadd.f32 0.0, %v1293
      %v1295 = vpop.f32.mrb[0].mxu0
      %1296 = vdwg.mxu0
      %v1297 = vld [vmem:[#allocation2] sm:$0xff]
      %v1298 = vld [vmem:[#allocation2 + $0x8] sm:$0xff]
      %v1299 = vld [vmem:[#allocation2 + $0x10] sm:$0xff]
      %v1300 = vld [vmem:[#allocation2 + $0x18] sm:$0xff]
      %v1301 = vld [vmem:[#allocation2 + $0x20] sm:$0xff]
      %v1302 = vld [vmem:[#allocation2 + $0x28] sm:$0xff]
      %v1303 = vld [vmem:[#allocation2 + $0x30] sm:$0xff]
      %v1304 = vld [vmem:[#allocation2 + $0x38] sm:$0xff]
      %v1305 = vld [vmem:[#allocation2 + $0x40] sm:$0xff]
      %v1306 = vld [vmem:[#allocation2 + $0x48] sm:$0xff]
      %v1307 = vld [vmem:[#allocation2 + $0x50] sm:$0xff]
      %v1308 = vld [vmem:[#allocation2 + $0x58] sm:$0xff]
      %v1309 = vld [vmem:[#allocation2 + $0x60] sm:$0xff]
      %v1310 = vld [vmem:[#allocation2 + $0x68] sm:$0xff]
      %v1311 = vld [vmem:[#allocation2 + $0x70] sm:$0xff]
      %v1312 = vld [vmem:[#allocation2 + $0x78] sm:$0xff]
      %v1313 = vadd.f32 %v1297, %v1219
      %v1314 = vadd.f32 %v1298, %v1224
      %v1315 = vadd.f32 %v1299, %v1229
      %v1316 = vadd.f32 %v1300, %v1234
      %v1317 = vadd.f32 %v1301, %v1239
      %v1318 = vadd.f32 %v1302, %v1244
      %v1319 = vadd.f32 %v1303, %v1249
      %v1320 = vadd.f32 %v1304, %v1254
      %v1321 = vadd.f32 %v1305, %v1259
      %v1322 = vadd.f32 %v1306, %v1264
      %v1323 = vadd.f32 %v1307, %v1269
      %v1324 = vadd.f32 %v1308, %v1274
      %v1325 = vadd.f32 %v1309, %v1279
      %v1326 = vadd.f32 %v1310, %v1284
      %v1327 = vadd.f32 %v1311, %v1289
      %v1328 = vadd.f32 %v1312, %v1294
      %1329 = vst.msk [vmem:[#allocation2] sm:$0xff] %vm291, %v1313
      %1330 = vst.msk [vmem:[#allocation2 + $0x8] sm:$0xff] %vm291, %v1314
      %1331 = vst.msk [vmem:[#allocation2 + $0x10] sm:$0xff] %vm291, %v1315
      %1332 = vst.msk [vmem:[#allocation2 + $0x18] sm:$0xff] %vm291, %v1316
      %1333 = vst.msk [vmem:[#allocation2 + $0x20] sm:$0xff] %vm291, %v1317
      %1334 = vst.msk [vmem:[#allocation2 + $0x28] sm:$0xff] %vm291, %v1318
      %1335 = vst.msk [vmem:[#allocation2 + $0x30] sm:$0xff] %vm291, %v1319
      %1336 = vst.msk [vmem:[#allocation2 + $0x38] sm:$0xff] %vm291, %v1320
      %1337 = vst.msk [vmem:[#allocation2 + $0x40] sm:$0xff] %vm291, %v1321
      %1338 = vst.msk [vmem:[#allocation2 + $0x48] sm:$0xff] %vm291, %v1322
      %1339 = vst.msk [vmem:[#allocation2 + $0x50] sm:$0xff] %vm291, %v1323
      %1340 = vst.msk [vmem:[#allocation2 + $0x58] sm:$0xff] %vm291, %v1324
      %1341 = vst.msk [vmem:[#allocation2 + $0x60] sm:$0xff] %vm291, %v1325
      %1342 = vst.msk [vmem:[#allocation2 + $0x68] sm:$0xff] %vm291, %v1326
      %1343 = vst.msk [vmem:[#allocation2 + $0x70] sm:$0xff] %vm291, %v1327
      %1344 = vst.msk [vmem:[#allocation2 + $0x78] sm:$0xff] %vm291, %v1328
      %p1345 = scmp.eq.s32.totalorder %s20, 7
      // Predicated region
      $region41: #{tpu_custom_call.1} parent=35 // pred_check
        %p1346 = pneg %p1345
      $region42: #{tpu_custom_call.1} parent=35 // pred_check_branch
        %1348 = sbr.rel (%p1346) target = $region44
      $region43: #{tpu_custom_call.1} parent=35 // pred_region
        %v1349 = vld [vmem:[#allocation2] sm:$0xff]
        %v1350 = vld [vmem:[#allocation2 + $0x8] sm:$0xff]
        %v1351 = vld [vmem:[#allocation2 + $0x10] sm:$0xff]
        %v1352 = vld [vmem:[#allocation2 + $0x18] sm:$0xff]
        %v1353 = vld [vmem:[#allocation2 + $0x20] sm:$0xff]
        %v1354 = vld [vmem:[#allocation2 + $0x28] sm:$0xff]
        %v1355 = vld [vmem:[#allocation2 + $0x30] sm:$0xff]
        %v1356 = vld [vmem:[#allocation2 + $0x38] sm:$0xff]
        %v1357 = vld [vmem:[#allocation2 + $0x40] sm:$0xff]
        %v1358 = vld [vmem:[#allocation2 + $0x48] sm:$0xff]
        %v1359 = vld [vmem:[#allocation2 + $0x50] sm:$0xff]
        %v1360 = vld [vmem:[#allocation2 + $0x58] sm:$0xff]
        %v1361 = vld [vmem:[#allocation2 + $0x60] sm:$0xff]
        %v1362 = vld [vmem:[#allocation2 + $0x68] sm:$0xff]
        %v1363 = vld [vmem:[#allocation2 + $0x70] sm:$0xff]
        %v1364 = vld [vmem:[#allocation2 + $0x78] sm:$0xff]
        %v1365 = vld [vmem:[%s3] sm:$0x1]
        %v1367 = vlaneseq
        %v1368 = vshrl.u32 %v1367, 7
        %v1369 = vsub.s32 0, %v1368
        %v1370 = vrot.slane %v1365, %v1369
        %v1372 = vadd.f32 %v1349, %v1370
        %v1373 = vadd.f32 %v1350, %v1370
        %v1374 = vadd.f32 %v1351, %v1370
        %v1375 = vadd.f32 %v1352, %v1370
        %v1376 = vadd.f32 %v1353, %v1370
        %v1377 = vadd.f32 %v1354, %v1370
        %v1378 = vadd.f32 %v1355, %v1370
        %v1379 = vadd.f32 %v1356, %v1370
        %v1380 = vadd.f32 %v1357, %v1370
        %v1381 = vadd.f32 %v1358, %v1370
        %v1382 = vadd.f32 %v1359, %v1370
        %v1383 = vadd.f32 %v1360, %v1370
        %v1384 = vadd.f32 %v1361, %v1370
        %v1385 = vadd.f32 %v1362, %v1370
        %v1386 = vadd.f32 %v1363, %v1370
        %v1387 = vadd.f32 %v1364, %v1370
        %1388 = vst.msk [vmem:[%s248] sm:$0xff] %vm291, %v1372
        %1389 = vst.msk [vmem:[%s248 + $0x8] sm:$0xff] %vm291, %v1373
        %1390 = vst.msk [vmem:[%s248 + $0x10] sm:$0xff] %vm291, %v1374
        %1391 = vst.msk [vmem:[%s248 + $0x18] sm:$0xff] %vm291, %v1375
        %1392 = vst.msk [vmem:[%s248 + $0x20] sm:$0xff] %vm291, %v1376
        %1393 = vst.msk [vmem:[%s248 + $0x28] sm:$0xff] %vm291, %v1377
        %1394 = vst.msk [vmem:[%s248 + $0x30] sm:$0xff] %vm291, %v1378
        %1395 = vst.msk [vmem:[%s248 + $0x38] sm:$0xff] %vm291, %v1379
        %1396 = vst.msk [vmem:[%s248 + $0x40] sm:$0xff] %vm291, %v1380
        %1397 = vst.msk [vmem:[%s248 + $0x48] sm:$0xff] %vm291, %v1381
        %1398 = vst.msk [vmem:[%s248 + $0x50] sm:$0xff] %vm291, %v1382
        %1399 = vst.msk [vmem:[%s248 + $0x58] sm:$0xff] %vm291, %v1383
        %1400 = vst.msk [vmem:[%s248 + $0x60] sm:$0xff] %vm291, %v1384
        %1401 = vst.msk [vmem:[%s248 + $0x68] sm:$0xff] %vm291, %v1385
        %1402 = vst.msk [vmem:[%s248 + $0x70] sm:$0xff] %vm291, %v1386
        %1403 = vst.msk [vmem:[%s248 + $0x78] sm:$0xff] %vm291, %v1387
      $region44: #{tpu_custom_call.1} parent=35 // pred_fallthru
        _
      %s1404 = smul.u32 16, %s19
      %p1405 = scmp.lt.s32.totalorder %s1404, 31
      %s1406 = scalar_select %p1405, %s1404, 31
      %s1407 = smul.addr %s1406, 8
      %s1408 = scalar_lea.vmem %s4, %s1407
      // Predicated region
      $region45: #{tpu_custom_call.1} parent=35 // pred_check
        %p1409 = pneg %p144
      $region46: #{tpu_custom_call.1} parent=35 // pred_check_branch
        %1411 = sbr.rel (%p1409) target = $region48
      $region47: #{tpu_custom_call.1} parent=35 // pred_region
        %s1412 = smul.u32 16, %s19
      $region48: #{tpu_custom_call.1} parent=35 // pred_fallthru
        _
    $region36: #{tpu_custom_call.1} parent=5 // pred_fallthru
      _
    %p1413 = scmp.le.s32.totalorder 2, %s10
    // Predicated region
    $region49: #{tpu_custom_call.1} parent=5 // pred_check
      %p1414 = pneg %p1413
    $region50: #{tpu_custom_call.1} parent=5 // pred_check_branch
      %1416 = sbr.rel (%p1414) target = $region52
    $region51: #{tpu_custom_call.1} parent=5 // pred_region
      %s1417 = ssub.s32 %s10, 2
      // Predicated region
      $region53: #{tpu_custom_call.1} parent=51 // pred_check
        %p1418 = pneg %p150
      $region54: #{tpu_custom_call.1} parent=51 // pred_check_branch
        %1420 = sbr.rel (%p1418) target = $region56
      $region55: #{tpu_custom_call.1} parent=51 // pred_region
        %s1421 = smul.u32 16, %s21
        %p1422 = scmp.lt.s32.totalorder %s1421, 31
        %s1423 = scalar_select %p1422, %s1421, 31
        %s1424 = smul.addr %s1423, 8
        %s1425 = scalar_lea.vmem %s4, %s1424
      $region56: #{tpu_custom_call.1} parent=51 // pred_fallthru
        _
    $region52: #{tpu_custom_call.1} parent=5 // pred_fallthru
      _
  $region6: #{tpu_custom_call.1} parent=0 // loop_footer
    %s14 = sadd.s32 1, %s10
  $region7: #{tpu_custom_call.1} parent=0 // loop_footer_branch
    %9 = sbr.rel target = $region3
  $region8: #{tpu_custom_call.1} parent=0 // loop_exit
    _

</llo_original>
